<compile_context>
chip_gen: v5e
topology: v5e:2x2
jax: 0.10.0
libtpu: 0.0.40
codegen_flags: <defaults>
</compile_context>

<pallas_src>
import functools

import jax
import jax.numpy as jnp
import numpy as np
from jax.experimental import pallas as pl
from jax.experimental.pallas import tpu as pltpu


# ---------------------------------------------------------------------------
# Kernel 1: embedding gather (HBM row DMAs) fused with X @ W1
# ---------------------------------------------------------------------------
def embed_xw1_kernel(idx_ref, emb_hbm_ref, w1_ref, xw1_ref, x_vmem, sem):
    """For one row tile of TM nodes: gather their embedding rows from the HBM
    table via per-row async DMAs (all overlapping, one shared DMA semaphore),
    then compute XW1_tile = X_tile @ W1 (bf16 operands, f32 accumulation)."""
    tm = x_vmem.shape[0]
    base = pl.program_id(0) * tm

    # Issue all TM row-gather DMAs; they all signal the same semaphore.
    @pl.loop(0, tm)
    def _start(r):
        word = idx_ref[base + r]                       # scalar read from SMEM
        pltpu.make_async_copy(
            emb_hbm_ref.at[pl.ds(word, 1), :],         # one HBM table row
            x_vmem.at[pl.ds(r, 1), :],                 # into VMEM scratch row
            sem.at[0],
        ).start()

    # Wait for all TM completions (equal-size transfers -> tm equal waits).
    @pl.loop(0, tm)
    def _wait(r):
        pltpu.make_async_copy(
            emb_hbm_ref.at[pl.ds(0, 1), :],            # same-size descriptor
            x_vmem.at[pl.ds(r, 1), :],
            sem.at[0],
        ).wait()

    xw1_ref[...] = jnp.dot(
        x_vmem[...].astype(jnp.bfloat16),
        w1_ref[...],
        preferred_element_type=jnp.float32,
    ).astype(xw1_ref.dtype)


# ---------------------------------------------------------------------------
# Kernel 2: H1_tile = relu(A_tile @ XW1 + b1), fused with XW2_tile = H1 @ W2
# ---------------------------------------------------------------------------
def gcn_fused_kernel(a_ref, xw_ref, b_ref, w_next_ref, out_ref):
    agg = jnp.dot(a_ref[...], xw_ref[...], preferred_element_type=jnp.float32)
    h = jnp.maximum(agg + b_ref[...], 0.0)
    out_ref[...] = jnp.dot(
        h.astype(jnp.bfloat16), w_next_ref[...],
        preferred_element_type=jnp.float32,
    ).astype(out_ref.dtype)


# ---------------------------------------------------------------------------
# Kernel 3: H2_tile = relu(A_tile @ XW2 + b2)
# ---------------------------------------------------------------------------
def gcn_final_kernel(a_ref, xw_ref, b_ref, out_ref):
    agg = jnp.dot(a_ref[...], xw_ref[...], preferred_element_type=jnp.float32)
    out_ref[...] = jnp.maximum(agg + b_ref[...], 0.0)


# ---------------------------------------------------------------------------
# Forward pass: three tiled pallas_calls + tiny XLA epilogue
# ---------------------------------------------------------------------------
@functools.partial(jax.jit, static_argnames=("tm",))
def feedback_forward(idx_pad, emb_pad, a_norm_bf16, pool_pad, params, *, tm):
    w1, b1, w2, b2, w3, b3 = params
    n_pad = a_norm_bf16.shape[0]
    embed_pad = emb_pad.shape[1]
    h1_dim = w1.shape[1]
    h2_pad = w2.shape[1]
    h2_valid = w3.shape[0]
    num_tiles = n_pad // tm
    parallel = pltpu.CompilerParams(dimension_semantics=("parallel",))

    # ---- Stage 1: gather embeddings + first feature transform (X @ W1) ----
    xw1 = pl.pallas_call(
        embed_xw1_kernel,
        out_shape=jax.ShapeDtypeStruct((n_pad, h1_dim), jnp.bfloat16),
        grid_spec=pltpu.PrefetchScalarGridSpec(
            num_scalar_prefetch=1,                      # idx lives in SMEM
            grid=(num_tiles,),
            in_specs=[
                pl.BlockSpec(memory_space=pl.ANY),      # embedding table in HBM
                pl.BlockSpec((embed_pad, h1_dim), lambda i, idx: (0, 0)),
            ],
            out_specs=pl.BlockSpec((tm, h1_dim), lambda i, idx: (i, 0)),
            scratch_shapes=[
                pltpu.VMEM((tm, embed_pad), jnp.float32),
                pltpu.SemaphoreType.DMA((1,)),
            ],
        ),
        compiler_params=parallel,
    )(idx_pad, emb_pad, w1)

    # ---- Stage 2: layer-1 aggregation + ReLU, fused with H1 @ W2 ----
    xw2 = pl.pallas_call(
        gcn_fused_kernel,
        out_shape=jax.ShapeDtypeStruct((n_pad, h2_pad), jnp.bfloat16),
        grid=(num_tiles,),
        in_specs=[
            pl.BlockSpec((tm, n_pad), lambda i: (i, 0)),       # A row tile
            pl.BlockSpec((n_pad, h1_dim), lambda i: (0, 0)),   # XW1 (resident)
            pl.BlockSpec((1, h1_dim), lambda i: (0, 0)),       # b1
            pl.BlockSpec((h1_dim, h2_pad), lambda i: (0, 0)),  # W2 (resident)
        ],
        out_specs=pl.BlockSpec((tm, h2_pad), lambda i: (i, 0)),
        compiler_params=parallel,
    )(a_norm_bf16, xw1, b1, w2)

    # ---- Stage 3: layer-2 aggregation + ReLU ----
    h2 = pl.pallas_call(
        gcn_final_kernel,
        out_shape=jax.ShapeDtypeStruct((n_pad, h2_pad), jnp.float32),
        grid=(num_tiles,),
        in_specs=[
            pl.BlockSpec((tm, n_pad), lambda i: (i, 0)),
            pl.BlockSpec((n_pad, h2_pad), lambda i: (0, 0)),
            pl.BlockSpec((1, h2_pad), lambda i: (0, 0)),
        ],
        out_specs=pl.BlockSpec((tm, h2_pad), lambda i: (i, 0)),
        compiler_params=parallel,
    )(a_norm_bf16, xw2, b2)

    # ---- Epilogue in plain XLA (tiny: [G,64] pool and [G,6] linear) ----
    pooled = jnp.dot(pool_pad, h2[:, :h2_valid])
    return jnp.maximum(jnp.dot(pooled, w3) + b3, 0.0)


# ---------------------------------------------------------------------------
# Pure-JAX reference mirroring the kernel's bf16/f32 precision choices
# ---------------------------------------------------------------------------
def reference_forward(idx_pad, emb_pad, a_norm_bf16, pool_pad, params):
    w1, b1, w2, b2, w3, b3 = params
    h2_valid = w3.shape[0]
    x = emb_pad[idx_pad].astype(jnp.bfloat16)
    xw1 = jnp.dot(x, w1, preferred_element_type=jnp.float32).astype(jnp.bfloat16)
    h1 = jnp.maximum(
        jnp.dot(a_norm_bf16, xw1, preferred_element_type=jnp.float32) + b1, 0.0)
    xw2 = jnp.dot(h1.astype(jnp.bfloat16), w2,
                  preferred_element_type=jnp.float32).astype(jnp.bfloat16)
    h2 = jnp.maximum(
        jnp.dot(a_norm_bf16, xw2, preferred_element_type=jnp.float32) + b2, 0.0)
    pooled = jnp.dot(pool_pad, h2[:, :h2_valid])
    return jnp.maximum(jnp.dot(pooled, w3) + b3, 0.0)


# ---------------------------------------------------------------------------
# Host-side glue (dense normalized adjacency + mean-pool matrix)
# ---------------------------------------------------------------------------
def build_gcn_adjacency(edge_index, num_nodes):
    """Dense D^{-1/2} (A + I) D^{-1/2}, matching PyG GCNConv normalization.
    Uses scatter-add so duplicate edges accumulate like PyG's message passing."""
    src = edge_index[0]
    dst = edge_index[1]
    a = np.zeros((num_nodes, num_nodes), dtype=np.float32)
    np.add.at(a, (dst, src), 1.0)                       # message flows src -> dst
    a_hat = a + np.eye(num_nodes, dtype=np.float32)     # add self loops
    deg = a_hat.sum(axis=1)
    d_inv_sqrt = 1.0 / np.sqrt(np.maximum(deg, 1e-12))
    return (d_inv_sqrt[:, None] * a_hat) * d_inv_sqrt[None, :]


def build_mean_pool_matrix(batch, num_graphs):
    n = batch.shape[0]
    p = np.zeros((num_graphs, n), dtype=np.float32)
    for g in range(num_graphs):
        mask = (batch == g)
        cnt = max(int(mask.sum()), 1)
        p[g, mask] = 1.0 / cnt
    return p


if __name__ == "__main__":
    # ---- small synthetic problem consistent with the module ----
    VOCAB = 64          # synthetic vocabulary size
    EMBED = 300         # frozen GloVe-style embedding dim
    EMBED_PAD = 384     # padded to 3 x 128 lanes
    H1 = 128            # GCN layer-1 width
    H2 = 64             # GCN layer-2 width
    H2_PAD = 128        # padded to one full lane register
    N_OUT = 6
    N_NODES = 16        # total word-nodes across all graphs
    N_GRAPHS = 2
    TM = 64             # node-row tile (multiple of 8, divides N_PAD)
    N_PAD = ((N_NODES + 127) // 128) * 128              # lane-dense A tiles
    assert N_PAD % TM == 0

    key = jax.random.PRNGKey(0)
    k_emb, k_w1, k_b1, k_w2, k_b2, k_w3, k_b3, k_idx = jax.random.split(key, 8)

    # frozen embedding matrix (row 0 = <pad> stays zero), padded to 384 cols, f32 in HBM
    emb = jax.random.normal(k_emb, (VOCAB, EMBED), dtype=jnp.float32) * 0.1
    emb = emb.at[0].set(0.0)
    emb_pad = jnp.zeros((VOCAB, EMBED_PAD), jnp.float32).at[:, :EMBED].set(emb)

    # GCN / linear parameters (zero-padded to lane-friendly shapes, bf16 for MXU)
    w1 = jax.random.normal(k_w1, (EMBED, H1), jnp.float32) / np.sqrt(EMBED)
    w1_pad = jnp.zeros((EMBED_PAD, H1), jnp.float32).at[:EMBED, :].set(w1)
    w1_pad = w1_pad.astype(jnp.bfloat16)
    b1 = 0.1 * jax.random.normal(k_b1, (1, H1), jnp.float32)

    w2 = jax.random.normal(k_w2, (H1, H2), jnp.float32) / np.sqrt(H1)
    w2_pad = jnp.zeros((H1, H2_PAD), jnp.float32).at[:, :H2].set(w2)
    w2_pad = w2_pad.astype(jnp.bfloat16)
    b2 = jnp.zeros((1, H2_PAD), jnp.float32).at[:, :H2].set(
        0.1 * jax.random.normal(k_b2, (1, H2), jnp.float32))

    w3 = jax.random.normal(k_w3, (H2, N_OUT), jnp.float32) / np.sqrt(H2)
    b3 = 0.1 * jax.random.normal(k_b3, (1, N_OUT), jnp.float32)
    params = (w1_pad, b1, w2_pad, b2, w3, b3)

    # node word indices (data.x.squeeze(1)); padded nodes point at <pad> (row 0)
    idx = jax.random.randint(k_idx, (N_NODES,), 1, VOCAB, dtype=jnp.int32)
    idx_pad = jnp.zeros((N_PAD,), jnp.int32).at[:N_NODES].set(idx)

    # two chain graphs of 8 nodes each, edges in both directions (undirected)
    edges = []
    for g in range(N_GRAPHS):
        base = g * 8
        for i in range(7):
            edges.append((base + i, base + i + 1))
            edges.append((base + i + 1, base + i))
    edge_index = np.array(edges, dtype=np.int32).T
    batch = np.array([0] * 8 + [1] * 8, dtype=np.int32)

    # dense normalized adjacency padded to [N_PAD, N_PAD] (zero rows/cols for pads), bf16
    a_norm = build_gcn_adjacency(edge_index, N_NODES)
    a_pad = np.zeros((N_PAD, N_PAD), dtype=np.float32)
    a_pad[:N_NODES, :N_NODES] = a_norm
    a_bf16 = jnp.asarray(a_pad).astype(jnp.bfloat16)
    # NOTE: for large text graphs, A_norm row tiles here are block-sparse; a
    # scalar-prefetched block mask + pl.when skip would drop the dense N^2 cost.

    # mean-pool matrix padded with zero columns for padded nodes
    pool = build_mean_pool_matrix(batch, N_GRAPHS)
    pool_pad_np = np.zeros((N_GRAPHS, N_PAD), dtype=np.float32)
    pool_pad_np[:, :N_NODES] = pool
    pool_pad = jnp.asarray(pool_pad_np)

    out = feedback_forward(idx_pad, emb_pad, a_bf16, pool_pad, params, tm=TM)
    out = jax.block_until_ready(out)

    ref = reference_forward(idx_pad, emb_pad, a_bf16, pool_pad, params)
    ref = jax.block_until_ready(ref)
    np.testing.assert_allclose(np.asarray(out), np.asarray(ref),
                               rtol=1e-2, atol=1e-3)

    assert out.shape == (N_GRAPHS, N_OUT)
    print("KERNEL_OK")
</pallas_src>

<mosaic_0001>
module attributes {stable_mosaic.version = 11 : i64} {
  func.func @gcn_final_kernel(%arg0: i32, %arg1: memref<64x128xbf16, #tpu.memory_space<vmem>>, %arg2: memref<128x128xbf16, #tpu.memory_space<vmem>>, %arg3: memref<1x128xf32, #tpu.memory_space<vmem>>, %arg4: memref<64x128xf32, #tpu.memory_space<vmem>>) attributes {dimension_semantics = [#tpu.dimension_semantics<parallel>], iteration_bounds = array<i64: 2>, scalar_prefetch = 0 : i64, scratch_operands = 0 : i64, tpu.core_type = #tpu.core_type<tc>, window_params = [{transform_indices = @transform_0, window_bounds = array<i64: 64, 128>}, {pipeline_mode = #tpu.pipeline_mode<synchronous>, transform_indices = @transform_1, window_bounds = array<i64: 128, 128>}, {pipeline_mode = #tpu.pipeline_mode<synchronous>, transform_indices = @transform_2, window_bounds = array<i64: 1, 128>}, {transform_indices = @transform_3, window_bounds = array<i64: 64, 128>}]} {
    %c0 = arith.constant 0 : index
    %c0_0 = arith.constant 0 : index
    %0 = vector.load %arg1[%c0, %c0_0] : memref<64x128xbf16, #tpu.memory_space<vmem>>, vector<64x128xbf16>
    %c0_1 = arith.constant 0 : index
    %c0_2 = arith.constant 0 : index
    %1 = vector.load %arg2[%c0_1, %c0_2] : memref<128x128xbf16, #tpu.memory_space<vmem>>, vector<128x128xbf16>
    %cst = arith.constant dense<0.000000e+00> : vector<64x128xf32>
    %2 = tpu.matmul %0, %1, %cst {dimension_numbers = #tpu.dot_dimension_numbers<[1], [0], [0], [1], [0, 0, 1, 1], [], []>} : vector<64x128xbf16>, vector<128x128xbf16>, vector<64x128xf32> -> vector<64x128xf32>
    %c0_3 = arith.constant 0 : index
    %c0_4 = arith.constant 0 : index
    %3 = vector.load %arg3[%c0_3, %c0_4] : memref<1x128xf32, #tpu.memory_space<vmem>>, vector<1x128xf32>
    %4 = vector.broadcast %3 : vector<1x128xf32> to vector<64x128xf32>
    %5 = arith.addf %2, %4 : vector<64x128xf32>
    %cst_5 = arith.constant 0.000000e+00 : f32
    %6 = vector.broadcast %cst_5 : f32 to vector<64x128xf32>
    %7 = arith.maximumf %5, %6 : vector<64x128xf32>
    %c0_6 = arith.constant 0 : index
    %c0_7 = arith.constant 0 : index
    %8 = vector.load %arg4[%c0_6, %c0_7] : memref<64x128xf32, #tpu.memory_space<vmem>>, vector<64x128xf32>
    tpu.vector_store %arg4[%c0_6, %c0_7], %7 {strides = array<i32>} : memref<64x128xf32, #tpu.memory_space<vmem>>, vector<64x128xf32>,
    return
  }
  func.func @transform_0(%arg0: i32) -> (i32, i32) {
    %c0_i32 = arith.constant 0 : i32
    %c0_i32_0 = arith.constant 0 : i32
    return %arg0, %c0_i32 : i32, i32
  }
  func.func @transform_1(%arg0: i32) -> (i32, i32) {
    %c0_i32 = arith.constant 0 : i32
    %c0_i32_0 = arith.constant 0 : i32
    %c0_i32_1 = arith.constant 0 : i32
    return %c0_i32, %c0_i32_0 : i32, i32
  }
  func.func @transform_2(%arg0: i32) -> (i32, i32) {
    %c0_i32 = arith.constant 0 : i32
    %c0_i32_0 = arith.constant 0 : i32
    %c0_i32_1 = arith.constant 0 : i32
    return %c0_i32, %c0_i32_0 : i32, i32
  }
  func.func @transform_3(%arg0: i32) -> (i32, i32) {
    %c0_i32 = arith.constant 0 : i32
    %c0_i32_0 = arith.constant 0 : i32
    return %arg0, %c0_i32 : i32, i32
  }
}

module attributes {stable_mosaic.version = 11 : i64} {
  func.func @gcn_fused_kernel(%arg0: i32, %arg1: memref<64x128xbf16, #tpu.memory_space<vmem>>, %arg2: memref<128x128xbf16, #tpu.memory_space<vmem>>, %arg3: memref<1x128xf32, #tpu.memory_space<vmem>>, %arg4: memref<128x128xbf16, #tpu.memory_space<vmem>>, %arg5: memref<64x128xbf16, #tpu.memory_space<vmem>>) attributes {dimension_semantics = [#tpu.dimension_semantics<parallel>], iteration_bounds = array<i64: 2>, scalar_prefetch = 0 : i64, scratch_operands = 0 : i64, tpu.core_type = #tpu.core_type<tc>, window_params = [{transform_indices = @transform_0, window_bounds = array<i64: 64, 128>}, {pipeline_mode = #tpu.pipeline_mode<synchronous>, transform_indices = @transform_1, window_bounds = array<i64: 128, 128>}, {pipeline_mode = #tpu.pipeline_mode<synchronous>, transform_indices = @transform_2, window_bounds = array<i64: 1, 128>}, {pipeline_mode = #tpu.pipeline_mode<synchronous>, transform_indices = @transform_3, window_bounds = array<i64: 128, 128>}, {transform_indices = @transform_4, window_bounds = array<i64: 64, 128>}]} {
    %c0 = arith.constant 0 : index
    %c0_0 = arith.constant 0 : index
    %0 = vector.load %arg1[%c0, %c0_0] : memref<64x128xbf16, #tpu.memory_space<vmem>>, vector<64x128xbf16>
    %c0_1 = arith.constant 0 : index
    %c0_2 = arith.constant 0 : index
    %1 = vector.load %arg2[%c0_1, %c0_2] : memref<128x128xbf16, #tpu.memory_space<vmem>>, vector<128x128xbf16>
    %cst = arith.constant dense<0.000000e+00> : vector<64x128xf32>
    %2 = tpu.matmul %0, %1, %cst {dimension_numbers = #tpu.dot_dimension_numbers<[1], [0], [0], [1], [0, 0, 1, 1], [], []>} : vector<64x128xbf16>, vector<128x128xbf16>, vector<64x128xf32> -> vector<64x128xf32>
    %c0_3 = arith.constant 0 : index
    %c0_4 = arith.constant 0 : index
    %3 = vector.load %arg3[%c0_3, %c0_4] : memref<1x128xf32, #tpu.memory_space<vmem>>, vector<1x128xf32>
    %4 = vector.broadcast %3 : vector<1x128xf32> to vector<64x128xf32>
    %5 = arith.addf %2, %4 : vector<64x128xf32>
    %cst_5 = arith.constant 0.000000e+00 : f32
    %6 = vector.broadcast %cst_5 : f32 to vector<64x128xf32>
    %7 = arith.maximumf %5, %6 : vector<64x128xf32>
    %8 = arith.truncf %7 : vector<64x128xf32> to vector<64x128xbf16>
    %c0_6 = arith.constant 0 : index
    %c0_7 = arith.constant 0 : index
    %9 = vector.load %arg4[%c0_6, %c0_7] : memref<128x128xbf16, #tpu.memory_space<vmem>>, vector<128x128xbf16>
    %cst_8 = arith.constant dense<0.000000e+00> : vector<64x128xf32>
    %10 = tpu.matmul %8, %9, %cst_8 {dimension_numbers = #tpu.dot_dimension_numbers<[1], [0], [0], [1], [0, 0, 1, 1], [], []>} : vector<64x128xbf16>, vector<128x128xbf16>, vector<64x128xf32> -> vector<64x128xf32>
    %11 = arith.truncf %10 : vector<64x128xf32> to vector<64x128xbf16>
    %c0_9 = arith.constant 0 : index
    %c0_10 = arith.constant 0 : index
    %12 = vector.load %arg5[%c0_9, %c0_10] : memref<64x128xbf16, #tpu.memory_space<vmem>>, vector<64x128xbf16>
    tpu.vector_store %arg5[%c0_9, %c0_10], %11 {strides = array<i32>} : memref<64x128xbf16, #tpu.memory_space<vmem>>, vector<64x128xbf16>,
    return
  }
  func.func @transform_0(%arg0: i32) -> (i32, i32) {
    %c0_i32 = arith.constant 0 : i32
    %c0_i32_0 = arith.constant 0 : i32
    return %arg0, %c0_i32 : i32, i32
  }
  func.func @transform_1(%arg0: i32) -> (i32, i32) {
    %c0_i32 = arith.constant 0 : i32
    %c0_i32_0 = arith.constant 0 : i32
    %c0_i32_1 = arith.constant 0 : i32
    return %c0_i32, %c0_i32_0 : i32, i32
  }
  func.func @transform_2(%arg0: i32) -> (i32, i32) {
    %c0_i32 = arith.constant 0 : i32
    %c0_i32_0 = arith.constant 0 : i32
    %c0_i32_1 = arith.constant 0 : i32
    return %c0_i32, %c0_i32_0 : i32, i32
  }
  func.func @transform_3(%arg0: i32) -> (i32, i32) {
    %c0_i32 = arith.constant 0 : i32
    %c0_i32_0 = arith.constant 0 : i32
    %c0_i32_1 = arith.constant 0 : i32
    return %c0_i32, %c0_i32_0 : i32, i32
  }
  func.func @transform_4(%arg0: i32) -> (i32, i32) {
    %c0_i32 = arith.constant 0 : i32
    %c0_i32_0 = arith.constant 0 : i32
    return %arg0, %c0_i32 : i32, i32
  }
}

module attributes {stable_mosaic.version = 11 : i64} {
  func.func @embed_xw1_kernel(%arg0: i32, %arg1: memref<128xi32, #tpu.memory_space<smem>>, %arg2: memref<64x384xf32, #tpu.memory_space<any>>, %arg3: memref<384x128xbf16, #tpu.memory_space<vmem>>, %arg4: memref<64x128xbf16, #tpu.memory_space<vmem>>, %arg5: memref<64x384xf32, #tpu.memory_space<vmem>>, %arg6: memref<1x!tpu.dma_semaphore, #tpu.memory_space<semaphore_mem>>) attributes {dimension_semantics = [#tpu.dimension_semantics<parallel>], iteration_bounds = array<i64: 2>, scalar_prefetch = 1 : i64, scratch_operands = 2 : i64, tpu.core_type = #tpu.core_type<tc>, window_params = [{}, {pipeline_mode = #tpu.pipeline_mode<synchronous>, transform_indices = @transform_1, window_bounds = array<i64: 384, 128>}, {transform_indices = @transform_2, window_bounds = array<i64: 64, 128>}]} {
    %c64_i32 = arith.constant 64 : i32
    %0 = arith.muli %arg0, %c64_i32 : i32
    %c0_i32 = arith.constant 0 : i32
    %c64_i32_0 = arith.constant 64 : i32
    %1 = arith.addi %c0_i32, %c64_i32_0 : i32
    %c1_i32 = arith.constant 1 : i32
    scf.for %arg7 = %c0_i32 to %1 step %c1_i32  : i32 {
      %c1_i32_11 = arith.constant 1 : i32
      %9 = arith.muli %arg7, %c1_i32_11 : i32
      %c0_i32_12 = arith.constant 0 : i32
      %10 = arith.addi %c0_i32_12, %9 : i32
      %11 = arith.addi %0, %10 : i32
      %12 = arith.index_cast %11 : i32 to index
      %13 = memref.load %arg1[%12] : memref<128xi32, #tpu.memory_space<smem>>
      %c0_i32_13 = arith.constant 0 : i32
      %c0_i32_14 = arith.constant 0 : i32
      %14 = tpu.memref_slice %arg2[%13, %c0_i32_14] : memref<64x384xf32, #tpu.memory_space<any>> -> memref<1x384xf32, #tpu.memory_space<any>>
      %c0_i32_15 = arith.constant 0 : i32
      %15 = tpu.memref_slice %arg5[%10, %c0_i32_15] : memref<64x384xf32, #tpu.memory_space<vmem>> -> memref<1x384xf32, #tpu.memory_space<vmem>>
      %16 = tpu.memref_slice %arg6[%c0_i32_13] : memref<1x!tpu.dma_semaphore, #tpu.memory_space<semaphore_mem>> -> memref<1x!tpu.dma_semaphore, #tpu.memory_space<semaphore_mem>>
      %17 = tpu.memref_squeeze %16 : memref<1x!tpu.dma_semaphore, #tpu.memory_space<semaphore_mem>> -> memref<!tpu.dma_semaphore, #tpu.memory_space<semaphore_mem>>
      tpu.enqueue_dma source(%14 : memref<1x384xf32, #tpu.memory_space<any>>) target(%15 : memref<1x384xf32, #tpu.memory_space<vmem>>) target_semaphore(%17 : memref<!tpu.dma_semaphore, #tpu.memory_space<semaphore_mem>>)
    }
    %c64_i32_1 = arith.constant 64 : i32
    %c0_i32_2 = arith.constant 0 : i32
    %c64_i32_3 = arith.constant 64 : i32
    %2 = arith.addi %c0_i32_2, %c64_i32_3 : i32
    %c1_i32_4 = arith.constant 1 : i32
    scf.for %arg7 = %c0_i32_2 to %2 step %c1_i32_4  : i32 {
      %c1_i32_11 = arith.constant 1 : i32
      %9 = arith.muli %arg7, %c1_i32_11 : i32
      %c0_i32_12 = arith.constant 0 : i32
      %10 = arith.addi %c0_i32_12, %9 : i32
      %c0_i32_13 = arith.constant 0 : i32
      %c0_i32_14 = arith.constant 0 : i32
      %c0_i32_15 = arith.constant 0 : i32
      %11 = tpu.memref_slice %arg2[%c0_i32_14, %c0_i32_15] : memref<64x384xf32, #tpu.memory_space<any>> -> memref<1x384xf32, #tpu.memory_space<any>>
      %c0_i32_16 = arith.constant 0 : i32
      %12 = tpu.memref_slice %arg5[%10, %c0_i32_16] : memref<64x384xf32, #tpu.memory_space<vmem>> -> memref<1x384xf32, #tpu.memory_space<vmem>>
      %13 = tpu.memref_slice %arg6[%c0_i32_13] : memref<1x!tpu.dma_semaphore, #tpu.memory_space<semaphore_mem>> -> memref<1x!tpu.dma_semaphore, #tpu.memory_space<semaphore_mem>>
      %14 = tpu.memref_squeeze %13 : memref<1x!tpu.dma_semaphore, #tpu.memory_space<semaphore_mem>> -> memref<!tpu.dma_semaphore, #tpu.memory_space<semaphore_mem>>
      tpu.wait_dma2 semaphore(%14 : memref<!tpu.dma_semaphore, #tpu.memory_space<semaphore_mem>>) src(%11 : memref<1x384xf32, #tpu.memory_space<any>>) dst(%12 : memref<1x384xf32, #tpu.memory_space<vmem>>)
    }
    %c64_i32_5 = arith.constant 64 : i32
    %c0 = arith.constant 0 : index
    %c0_6 = arith.constant 0 : index
    %3 = vector.load %arg5[%c0, %c0_6] : memref<64x384xf32, #tpu.memory_space<vmem>>, vector<64x384xf32>
    %4 = arith.truncf %3 : vector<64x384xf32> to vector<64x384xbf16>
    %c0_7 = arith.constant 0 : index
    %c0_8 = arith.constant 0 : index
    %5 = vector.load %arg3[%c0_7, %c0_8] : memref<384x128xbf16, #tpu.memory_space<vmem>>, vector<384x128xbf16>
    %cst = arith.constant dense<0.000000e+00> : vector<64x128xf32>
    %6 = tpu.matmul %4, %5, %cst {dimension_numbers = #tpu.dot_dimension_numbers<[1], [0], [0], [1], [0, 0, 1, 1], [], []>} : vector<64x384xbf16>, vector<384x128xbf16>, vector<64x128xf32> -> vector<64x128xf32>
    %7 = arith.truncf %6 : vector<64x128xf32> to vector<64x128xbf16>
    %c0_9 = arith.constant 0 : index
    %c0_10 = arith.constant 0 : index
    %8 = vector.load %arg4[%c0_9, %c0_10] : memref<64x128xbf16, #tpu.memory_space<vmem>>, vector<64x128xbf16>
    tpu.vector_store %arg4[%c0_9, %c0_10], %7 {strides = array<i32>} : memref<64x128xbf16, #tpu.memory_space<vmem>>, vector<64x128xbf16>,
    return
  }
  func.func @transform_1(%arg0: i32, %arg1: memref<128xi32, #tpu.memory_space<smem>>) -> (i32, i32) {
    %c0_i32 = arith.constant 0 : i32
    %c0_i32_0 = arith.constant 0 : i32
    %c0_i32_1 = arith.constant 0 : i32
    return %c0_i32, %c0_i32_0 : i32, i32
  }
  func.func @transform_2(%arg0: i32, %arg1: memref<128xi32, #tpu.memory_space<smem>>) -> (i32, i32) {
    %c0_i32 = arith.constant 0 : i32
    %c0_i32_0 = arith.constant 0 : i32
    return %arg0, %c0_i32 : i32, i32
  }
}

</mosaic_0001>

<llo_original>
// kernel: feedback_forward.5
$region0: #{feedback_forward.5}
  #allocation0 [shape = 'u32[]', space=smem, size = 0x4, offset = 0x4, fixed_abs, tag = 'smem constant byte address 0x4 - core index']
  #allocation1 [shape = 'u32[72,128]{1,0:T(1,128)}', space=vmem, size = 0x9000, scoped, tag = 'internal scratch']
  %s0 = inlined_call_operand.hbm [shape: bf16[128,128], index: 0, kind: input, shape index: {}]
  %s1 = inlined_call_operand.vmem [shape: bf16[128,128], index: 1, kind: input, shape index: {}]
  %s2 = inlined_call_operand.vmem [shape: f32[1,128], index: 2, kind: input, shape index: {}]
  %s3 = inlined_call_operand.vmem [shape: f32[128,128], index: 3, kind: output, shape index: {}]
  %s4 = sld [smem:[#allocation0]]
  $region49: #{feedback_forward.5} parent=0
    _
  %s6 = ssub.s32 1, %s4
  %s7 = scalar_select 0, %s6, %s4
  $region1: #{feedback_forward.5} parent=0
    #allocation2 [shape = 'u8[32768]{0}', space=vmem, size = 0x8000, scoped, tag = 'input window, operand 0']
    #allocation3 [shape = 's32[2]{0}', space=sflag, size = 0x8, scoped, tag = 'scoped memory for feedback_forward.5']
    %8 = vsyncpa [#allocation3], 0
    %s9 = scalar_lea.sflag [#allocation3], 1
    %10 = vsyncpa %s9, 0
    loop: start=0, step=1, limit=4
    $region2: #{feedback_forward.5} parent=1 // loop_pre_header
      _
    $region3: #{feedback_forward.5} parent=1 // loop_header
      %s12 = sphi 0, %s16
      %p13 = scmp.ge.s32.totalorder %s12, 4
      %s22 = sphi 0, %s24
      %s25 = sphi 0, %s22
      %s26 = sphi 0, %s25
      %s42 = sphi 0, %s26
      %s46 = sphi 0, %s46
      %s48 = sphi 0, %s46
      %s49 = sphi 0, %s48
      %s63 = sphi 0, %s49
      %s67 = sphi 0, %s67
      %s69 = sphi 0, %s67
      %s70 = sphi 0, %s69
      %s84 = sphi 0, %s70
      %s90 = sphi 0, %s92
      %s93 = sphi 0, %s90
      %s94 = sphi 0, %s93
      %s110 = sphi 0, %s94
    $region4: #{feedback_forward.5} parent=1 // loop_header_branch
      %15 = sbr.rel (%p13) target = $region8
    $region5: #{feedback_forward.5} parent=1 // loop_body
      %s17 = ssub.s32 %s12, 1
      %s18 = ssub.s32 %s12, 2
      %s19 = sadd.s32 %s12, 1
      %s20 = ssub.s32 %s12, %s19
      %p21 = scmp.eq.s32.totalorder %s20, 0
      %s23 = sadd.s32 %s22, 1
      %s24 = scalar_select %p21, %s22, %s23
      %p27 = pneg %p21
      %p28 = scmp.eq.s32.totalorder %s12, 1
      %p29 = por %p27, %p28
      %p30 = scmp.ne.s32.totalorder %s22, %s25
      %p31 = scmp.eq.s32.totalorder %s12, 0
      %p32 = por %p30, %p31
      %p33 = scmp.ne.s32.totalorder %s22, %s25
      %p34 = scmp.eq.s32.totalorder %s17, 1
      %p35 = por %p33, %p34
      %p36 = scmp.ne.s32.totalorder %s25, %s26
      %p37 = scmp.eq.s32.totalorder %s17, 0
      %p38 = por %p36, %p37
      %p39 = scmp.ne.s32.totalorder %s25, %s26
      %p40 = scmp.eq.s32.totalorder %s18, 1
      %p41 = por %p39, %p40
      %p43 = scmp.ne.s32.totalorder %s26, %s42
      %p44 = scmp.eq.s32.totalorder %s18, 0
      %p45 = por %p43, %p44
      %s47 = sadd.s32 %s46, 1
      %p50 = scmp.eq.s32.totalorder %s12, 1
      %p51 = scmp.ne.s32.totalorder %s46, %s48
      %p52 = scmp.eq.s32.totalorder %s12, 0
      %p53 = por %p51, %p52
      %p54 = scmp.ne.s32.totalorder %s46, %s48
      %p55 = scmp.eq.s32.totalorder %s17, 1
      %p56 = por %p54, %p55
      %p57 = scmp.ne.s32.totalorder %s48, %s49
      %p58 = scmp.eq.s32.totalorder %s17, 0
      %p59 = por %p57, %p58
      %p60 = scmp.ne.s32.totalorder %s48, %s49
      %p61 = scmp.eq.s32.totalorder %s18, 1
      %p62 = por %p60, %p61
      %p64 = scmp.ne.s32.totalorder %s49, %s63
      %p65 = scmp.eq.s32.totalorder %s18, 0
      %p66 = por %p64, %p65
      %s68 = sadd.s32 %s67, 1
      %p71 = scmp.eq.s32.totalorder %s12, 1
      %p72 = scmp.ne.s32.totalorder %s67, %s69
      %p73 = scmp.eq.s32.totalorder %s12, 0
      %p74 = por %p72, %p73
      %p75 = scmp.ne.s32.totalorder %s67, %s69
      %p76 = scmp.eq.s32.totalorder %s17, 1
      %p77 = por %p75, %p76
      %p78 = scmp.ne.s32.totalorder %s69, %s70
      %p79 = scmp.eq.s32.totalorder %s17, 0
      %p80 = por %p78, %p79
      %p81 = scmp.ne.s32.totalorder %s69, %s70
      %p82 = scmp.eq.s32.totalorder %s18, 1
      %p83 = por %p81, %p82
      %p85 = scmp.ne.s32.totalorder %s70, %s84
      %p86 = scmp.eq.s32.totalorder %s18, 0
      %p87 = por %p85, %p86
      %s88 = ssub.s32 %s12, %s19
      %p89 = scmp.eq.s32.totalorder %s88, 0
      %s91 = sadd.s32 %s90, 1
      %s92 = scalar_select %p89, %s90, %s91
      %p95 = pneg %p89
      %p96 = scmp.eq.s32.totalorder %s12, 1
      %p97 = por %p95, %p96
      %p98 = scmp.ne.s32.totalorder %s90, %s93
      %p99 = scmp.eq.s32.totalorder %s12, 0
      %p100 = por %p98, %p99
      %p101 = scmp.ne.s32.totalorder %s90, %s93
      %p102 = scmp.eq.s32.totalorder %s17, 1
      %p103 = por %p101, %p102
      %p104 = scmp.ne.s32.totalorder %s93, %s94
      %p105 = scmp.eq.s32.totalorder %s17, 0
      %p106 = por %p104, %p105
      %p107 = scmp.ne.s32.totalorder %s93, %s94
      %p108 = scmp.eq.s32.totalorder %s18, 1
      %p109 = por %p107, %p108
      %p111 = scmp.ne.s32.totalorder %s94, %s110
      %p112 = scmp.eq.s32.totalorder %s18, 0
      %p113 = por %p111, %p112
      %p114 = scmp.le.s32.totalorder 1, %s12
      %p115 = scmp.lt.s32.totalorder %s12, 3
      %p116 = pnand %p114, %p115
      %p117 = pneg %p116
      // Predicated region
      $region9: #{feedback_forward.5} parent=5 // pred_check
        _
      $region10: #{feedback_forward.5} parent=5 // pred_check_branch
        %119 = sbr.rel (%p116) target = $region12
      $region11: #{feedback_forward.5} parent=5 // pred_region
        %s120 = ssub.s32 %s12, 1
        // Predicated region
        $region13: #{feedback_forward.5} parent=11 // pred_check
          %p121 = pneg %p59
        $region14: #{feedback_forward.5} parent=11 // pred_check_branch
          %123 = sbr.rel (%p121) target = $region16
        $region15: #{feedback_forward.5} parent=11 // pred_region
          _
        $region16: #{feedback_forward.5} parent=11 // pred_fallthru
          _
        // Predicated region
        $region17: #{feedback_forward.5} parent=11 // pred_check
          %p124 = pneg %p80
        $region18: #{feedback_forward.5} parent=11 // pred_check_branch
          %126 = sbr.rel (%p124) target = $region20
        $region19: #{feedback_forward.5} parent=11 // pred_region
          _
        $region20: #{feedback_forward.5} parent=11 // pred_fallthru
          _
      $region12: #{feedback_forward.5} parent=5 // pred_fallthru
        _
      %p127 = scmp.lt.s32.totalorder %s12, 2
      // Predicated region
      $region21: #{feedback_forward.5} parent=5 // pred_check
        %p128 = pneg %p127
      $region22: #{feedback_forward.5} parent=5 // pred_check_branch
        %130 = sbr.rel (%p128) target = $region24
      $region23: #{feedback_forward.5} parent=5 // pred_region
        // Predicated region
        $region25: #{feedback_forward.5} parent=23 // pred_check
          %p131 = pneg %p32
        $region26: #{feedback_forward.5} parent=23 // pred_check_branch
          %133 = sbr.rel (%p131) target = $region28
        $region27: #{feedback_forward.5} parent=23 // pred_region
          %s134 = sand.u32 %s22, 1
          %s135 = scalar_lea.sflag [#allocation3], %s134
          %s136 = sand.u32 %s22, 1
          %s137 = smul.addr %s136, 32
          %s138 = scalar_lea.vmem [#allocation2], %s137
          %s139 = smul.u32 8, %s12
          %141 = vsyncadd %s135, 0
          %s142 = smul.addr %s139, 4
          %s143 = scalar_lea.hbm %s0, %s142
          %s144 = sshll.u32 %s143, 4
          %s145 = int_to_ptr.hbm [resolvable:$true] %s144
          %s146 = sshll.u32 %s138, 4
          %s147 = int_to_ptr.vmem [resolvable:$true] %s146
          %152 = dma.hbm_to_vmem [thread:$0]  %s145, 512, %s147, %s135, 64, 64, 4
        $region28: #{feedback_forward.5} parent=23 // pred_fallthru
          _
      $region24: #{feedback_forward.5} parent=5 // pred_fallthru
        _
      %p153 = scmp.le.s32.totalorder 1, %s12
      %p154 = scmp.lt.s32.totalorder %s12, 3
      %p155 = pnand %p153, %p154
      %p156 = pneg %p155
      // Predicated region
      $region29: #{feedback_forward.5} parent=5 // pred_check
        _
      $region30: #{feedback_forward.5} parent=5 // pred_check_branch
        %158 = sbr.rel (%p155) target = $region32
      $region31: #{feedback_forward.5} parent=5 // pred_region
        %s159 = ssub.s32 %s12, 1
        %s160 = sand.u32 %s25, 1
        %s161 = scalar_lea.sflag [#allocation3], %s160
        %s162 = sand.u32 %s25, 1
        %s163 = smul.addr %s162, 32
        %s164 = scalar_lea.vmem [#allocation2], %s163
        // Predicated region
        $region33: #{feedback_forward.5} parent=31 // pred_check
          %p165 = pneg %p38
        $region34: #{feedback_forward.5} parent=31 // pred_check_branch
          %167 = sbr.rel (%p165) target = $region36
        $region35: #{feedback_forward.5} parent=31 // pred_region
          %169 = dma.done %s161, 512
        $region36: #{feedback_forward.5} parent=31 // pred_fallthru
          _
        %s170 = sand.u32 %s25, 1
        %s171 = scalar_lea.sflag [#allocation3], %s170
        %s172 = sand.u32 %s25, 1
        %s173 = smul.addr %s172, 32
        %s174 = scalar_lea.vmem [#allocation2], %s173
        %p175 = pneg %p38
        %p176 = pneg %p35
        %p177 = pneg %p59
        %p178 = pneg %p56
        %p179 = pneg %p80
        %p180 = pneg %p77
        %p181 = pneg %p106
        %p182 = pneg %p103
        %s183 = smul.u32 8, %s17
        %p184 = scmp.lt.s32.totalorder %s183, 15
        %s185 = scalar_select %p184, %s183, 15
        %s186 = smul.addr %s185, 8
        %s187 = scalar_lea.vmem %s3, %s186
        %s188 = smul.u32 8, %s17
        %s189 = smul.u32 8, %s17
        %p190 = scmp.lt.s32.totalorder %s189, 15
        %s191 = scalar_select %p190, %s189, 15
        %s192 = smul.addr %s191, 8
        %s193 = scalar_lea.vmem %s3, %s192
        %s194 = smul.u32 8, %s17
        %v195 = vld [vmem:[%s164] sm:$0xf]
        %v196 = vld [vmem:[%s164 + $0x4] sm:$0xf]
        %v197 = vld [vmem:[%s164 + $0x8] sm:$0xf]
        %v198 = vld [vmem:[%s164 + $0xc] sm:$0xf]
        %v199 = vld [vmem:[%s164 + $0x10] sm:$0xf]
        %v200 = vld [vmem:[%s164 + $0x14] sm:$0xf]
        %v201 = vld [vmem:[%s164 + $0x18] sm:$0xf]
        %v202 = vld [vmem:[%s164 + $0x1c] sm:$0xf]
        %v203 = vld [vmem:[%s1] sm:$0xf]
        %v204 = vld [vmem:[%s1 + $0x4] sm:$0xf]
        %v205 = vld [vmem:[%s1 + $0x8] sm:$0xf]
        %v206 = vld [vmem:[%s1 + $0xc] sm:$0xf]
        %v207 = vld [vmem:[%s1 + $0x10] sm:$0xf]
        %v208 = vld [vmem:[%s1 + $0x14] sm:$0xf]
        %v209 = vld [vmem:[%s1 + $0x18] sm:$0xf]
        %v210 = vld [vmem:[%s1 + $0x1c] sm:$0xf]
        %v211 = vld [vmem:[%s1 + $0x20] sm:$0xf]
        %v212 = vld [vmem:[%s1 + $0x24] sm:$0xf]
        %v213 = vld [vmem:[%s1 + $0x28] sm:$0xf]
        %v214 = vld [vmem:[%s1 + $0x2c] sm:$0xf]
        %v215 = vld [vmem:[%s1 + $0x30] sm:$0xf]
        %v216 = vld [vmem:[%s1 + $0x34] sm:$0xf]
        %v217 = vld [vmem:[%s1 + $0x38] sm:$0xf]
        %v218 = vld [vmem:[%s1 + $0x3c] sm:$0xf]
        %v219 = vld [vmem:[%s2] sm:$0x1]
        %v221 = vperm.slane %v219, 0
        %v231 = vunpack.c.l.b16 %v195
        %v232 = vunpack.c.l.b16 %v196
        %v233 = vunpack.c.l.b16 %v197
        %v234 = vunpack.c.l.b16 %v198
        %v235 = vunpack.c.l.b16 %v199
        %v236 = vunpack.c.l.b16 %v200
        %v237 = vunpack.c.l.b16 %v201
        %v238 = vunpack.c.l.b16 %v202
        %v239 = vpack.c.b16 %v232, %v231
        %v240 = vpack.c.b16 %v234, %v233
        %v241 = vpack.c.b16 %v236, %v235
        %v242 = vpack.c.b16 %v238, %v237
        %v263 = vunpack.c.l.b16 %v203
        %v264 = vunpack.c.l.b16 %v204
        %v265 = vunpack.c.l.b16 %v205
        %v266 = vunpack.c.l.b16 %v206
        %v267 = vunpack.c.l.b16 %v207
        %v268 = vunpack.c.l.b16 %v208
        %v269 = vunpack.c.l.b16 %v209
        %v270 = vunpack.c.l.b16 %v210
        %v271 = vunpack.c.l.b16 %v211
        %v272 = vunpack.c.l.b16 %v212
        %v273 = vunpack.c.l.b16 %v213
        %v274 = vunpack.c.l.b16 %v214
        %v275 = vunpack.c.l.b16 %v215
        %v276 = vunpack.c.l.b16 %v216
        %v277 = vunpack.c.l.b16 %v217
        %v278 = vunpack.c.l.b16 %v218
        %v279 = vpack.c.b16 %v264, %v263
        %v280 = vpack.c.b16 %v266, %v265
        %v281 = vpack.c.b16 %v268, %v267
        %v282 = vpack.c.b16 %v270, %v269
        %v283 = vpack.c.b16 %v272, %v271
        %v284 = vpack.c.b16 %v274, %v273
        %v285 = vpack.c.b16 %v276, %v275
        %v286 = vpack.c.b16 %v278, %v277
        %295 = vmatpush.bf16.msra.mxu0 %v286
        %296 = vmatpush.bf16.msra.mxu0 %v285
        %297 = vmatpush.bf16.msra.mxu0 %v284
        %298 = vmatpush.bf16.msra.mxu0 %v283
        %299 = vmatpush.bf16.msra.mxu0 %v282
        %300 = vmatpush.bf16.msra.mxu0 %v281
        %301 = vmatpush.bf16.msra.mxu0 %v280
        %302 = vmatpush.bf16.msra.mxu0 %v279
        %303 = vmatmul.bf16.gmra.mxu0 %v239
        %v304 = vpop.f32.mrf.mxu0
        %v305 = vadd.f32 %v221, %v304
        %v306 = vpop.f32.mrf.mxu0
        %v307 = vadd.f32 %v221, %v306
        %308 = vmatmul.bf16.gmra.mxu0 %v240
        %v309 = vpop.f32.mrf.mxu0
        %v310 = vadd.f32 %v221, %v309
        %v311 = vpop.f32.mrf.mxu0
        %v312 = vadd.f32 %v221, %v311
        %313 = vmatmul.bf16.gmra.mxu0 %v241
        %v314 = vpop.f32.mrf.mxu0
        %v315 = vadd.f32 %v221, %v314
        %v316 = vpop.f32.mrf.mxu0
        %v317 = vadd.f32 %v221, %v316
        %318 = vmatmul.bf16.gmra.mxu0 %v242
        %v319 = vpop.f32.mrf.mxu0
        %v320 = vadd.f32 %v221, %v319
        %v321 = vpop.f32.mrf.mxu0
        %v322 = vadd.f32 %v221, %v321
        %323 = vdwg.mxu0
        %v324 = vmax.f32 %v305, 0.0
        %v325 = vmax.f32 %v307, 0.0
        %v326 = vmax.f32 %v310, 0.0
        %v327 = vmax.f32 %v312, 0.0
        %v328 = vmax.f32 %v315, 0.0
        %v329 = vmax.f32 %v317, 0.0
        %v330 = vmax.f32 %v320, 0.0
        %v331 = vmax.f32 %v322, 0.0
        %332 = vst [vmem:[%s193] sm:$0xff] %v324
        %333 = vst [vmem:[%s193 + $0x8] sm:$0xff] %v325
        %334 = vst [vmem:[%s193 + $0x10] sm:$0xff] %v326
        %335 = vst [vmem:[%s193 + $0x18] sm:$0xff] %v327
        %336 = vst [vmem:[%s193 + $0x20] sm:$0xff] %v328
        %337 = vst [vmem:[%s193 + $0x28] sm:$0xff] %v329
        %338 = vst [vmem:[%s193 + $0x30] sm:$0xff] %v330
        %339 = vst [vmem:[%s193 + $0x38] sm:$0xff] %v331
        %s340 = smul.u32 8, %s17
        %p341 = scmp.lt.s32.totalorder %s340, 15
        %s342 = scalar_select %p341, %s340, 15
        %s343 = smul.addr %s342, 8
        %s344 = scalar_lea.vmem %s3, %s343
        // Predicated region
        $region37: #{feedback_forward.5} parent=31 // pred_check
          %p345 = pneg %p103
        $region38: #{feedback_forward.5} parent=31 // pred_check_branch
          %347 = sbr.rel (%p345) target = $region40
        $region39: #{feedback_forward.5} parent=31 // pred_region
          %s348 = smul.u32 8, %s17
        $region40: #{feedback_forward.5} parent=31 // pred_fallthru
          _
      $region32: #{feedback_forward.5} parent=5 // pred_fallthru
        _
      %p349 = scmp.le.s32.totalorder 2, %s12
      // Predicated region
      $region41: #{feedback_forward.5} parent=5 // pred_check
        %p350 = pneg %p349
      $region42: #{feedback_forward.5} parent=5 // pred_check_branch
        %352 = sbr.rel (%p350) target = $region44
      $region43: #{feedback_forward.5} parent=5 // pred_region
        %s353 = ssub.s32 %s12, 2
        // Predicated region
        $region45: #{feedback_forward.5} parent=43 // pred_check
          %p354 = pneg %p109
        $region46: #{feedback_forward.5} parent=43 // pred_check_branch
          %356 = sbr.rel (%p354) target = $region48
        $region47: #{feedback_forward.5} parent=43 // pred_region
          %s357 = smul.u32 8, %s18
          %p358 = scmp.lt.s32.totalorder %s357, 15
          %s359 = scalar_select %p358, %s357, 15
          %s360 = smul.addr %s359, 8
          %s361 = scalar_lea.vmem %s3, %s360
        $region48: #{feedback_forward.5} parent=43 // pred_fallthru
          _
      $region44: #{feedback_forward.5} parent=5 // pred_fallthru
        _
    $region6: #{feedback_forward.5} parent=1 // loop_footer
      %s16 = sadd.s32 1, %s12
    $region7: #{feedback_forward.5} parent=1 // loop_footer_branch
      %11 = sbr.rel target = $region3
    $region8: #{feedback_forward.5} parent=1 // loop_exit
      _
    %362 = vsyncpa [#allocation3], 1
    %s363 = scalar_lea.sflag [#allocation3], 1
    %364 = vsyncpa %s363, 1

// kernel: feedback_forward.4
$region0: #{feedback_forward.4}
  #allocation0 [shape = 'u32[]', space=smem, size = 0x4, offset = 0x4, fixed_abs, tag = 'smem constant byte address 0x4 - core index']
  #allocation1 [shape = 'u32[72,128]{1,0:T(1,128)}', space=vmem, size = 0x9000, scoped, tag = 'internal scratch']
  %s0 = inlined_call_operand.hbm [shape: bf16[128,128], index: 0, kind: input, shape index: {}]
  %s1 = inlined_call_operand.vmem [shape: bf16[128,128], index: 1, kind: input, shape index: {}]
  %s2 = inlined_call_operand.vmem [shape: f32[1,128], index: 2, kind: input, shape index: {}]
  %s3 = inlined_call_operand.hbm [shape: bf16[128,128], index: 3, kind: input, shape index: {}]
  %s4 = inlined_call_operand.vmem [shape: bf16[128,128], index: 4, kind: output, shape index: {}]
  %s5 = sld [smem:[#allocation0]]
  $region57: #{feedback_forward.4} parent=0
    _
  %s7 = ssub.s32 1, %s5
  %s8 = scalar_select 0, %s7, %s5
  $region1: #{feedback_forward.4} parent=0
    #allocation2 [shape = 'u8[32768]{0}', space=vmem, size = 0x8000, scoped, tag = 'input window, operand 0']
    #allocation3 [shape = 's32[2]{0}', space=sflag, size = 0x8, scoped, tag = 'scoped memory for feedback_forward.4']
    #allocation4 [shape = 'u8[32768]{0}', space=vmem, size = 0x8000, scoped, tag = 'input window, operand 3, single buffered']
    #allocation5 [shape = 's32[1]{0}', space=sflag, size = 0x4, scoped, tag = 'scoped memory for feedback_forward.4']
    %9 = vsyncpa [#allocation3], 0
    %s10 = scalar_lea.sflag [#allocation3], 1
    %11 = vsyncpa %s10, 0
    %12 = vsyncpa [#allocation5], 0
    loop: start=0, step=1, limit=4
    $region2: #{feedback_forward.4} parent=1 // loop_pre_header
      _
    $region3: #{feedback_forward.4} parent=1 // loop_header
      %s14 = sphi 0, %s18
      %p15 = scmp.ge.s32.totalorder %s14, 4
      %s24 = sphi 0, %s26
      %s27 = sphi 0, %s24
      %s28 = sphi 0, %s27
      %s44 = sphi 0, %s28
      %s48 = sphi 0, %s48
      %s50 = sphi 0, %s48
      %s51 = sphi 0, %s50
      %s65 = sphi 0, %s51
      %s69 = sphi 0, %s69
      %s71 = sphi 0, %s69
      %s72 = sphi 0, %s71
      %s86 = sphi 0, %s72
      %s90 = sphi 0, %s90
      %s92 = sphi 0, %s90
      %s93 = sphi 0, %s92
      %s107 = sphi 0, %s93
      %s113 = sphi 0, %s115
      %s116 = sphi 0, %s113
      %s117 = sphi 0, %s116
      %s133 = sphi 0, %s117
    $region4: #{feedback_forward.4} parent=1 // loop_header_branch
      %17 = sbr.rel (%p15) target = $region8
    $region5: #{feedback_forward.4} parent=1 // loop_body
      %s19 = ssub.s32 %s14, 1
      %s20 = ssub.s32 %s14, 2
      %s21 = sadd.s32 %s14, 1
      %s22 = ssub.s32 %s14, %s21
      %p23 = scmp.eq.s32.totalorder %s22, 0
      %s25 = sadd.s32 %s24, 1
      %s26 = scalar_select %p23, %s24, %s25
      %p29 = pneg %p23
      %p30 = scmp.eq.s32.totalorder %s14, 1
      %p31 = por %p29, %p30
      %p32 = scmp.ne.s32.totalorder %s24, %s27
      %p33 = scmp.eq.s32.totalorder %s14, 0
      %p34 = por %p32, %p33
      %p35 = scmp.ne.s32.totalorder %s24, %s27
      %p36 = scmp.eq.s32.totalorder %s19, 1
      %p37 = por %p35, %p36
      %p38 = scmp.ne.s32.totalorder %s27, %s28
      %p39 = scmp.eq.s32.totalorder %s19, 0
      %p40 = por %p38, %p39
      %p41 = scmp.ne.s32.totalorder %s27, %s28
      %p42 = scmp.eq.s32.totalorder %s20, 1
      %p43 = por %p41, %p42
      %p45 = scmp.ne.s32.totalorder %s28, %s44
      %p46 = scmp.eq.s32.totalorder %s20, 0
      %p47 = por %p45, %p46
      %s49 = sadd.s32 %s48, 1
      %p52 = scmp.eq.s32.totalorder %s14, 1
      %p53 = scmp.ne.s32.totalorder %s48, %s50
      %p54 = scmp.eq.s32.totalorder %s14, 0
      %p55 = por %p53, %p54
      %p56 = scmp.ne.s32.totalorder %s48, %s50
      %p57 = scmp.eq.s32.totalorder %s19, 1
      %p58 = por %p56, %p57
      %p59 = scmp.ne.s32.totalorder %s50, %s51
      %p60 = scmp.eq.s32.totalorder %s19, 0
      %p61 = por %p59, %p60
      %p62 = scmp.ne.s32.totalorder %s50, %s51
      %p63 = scmp.eq.s32.totalorder %s20, 1
      %p64 = por %p62, %p63
      %p66 = scmp.ne.s32.totalorder %s51, %s65
      %p67 = scmp.eq.s32.totalorder %s20, 0
      %p68 = por %p66, %p67
      %s70 = sadd.s32 %s69, 1
      %p73 = scmp.eq.s32.totalorder %s14, 1
      %p74 = scmp.ne.s32.totalorder %s69, %s71
      %p75 = scmp.eq.s32.totalorder %s14, 0
      %p76 = por %p74, %p75
      %p77 = scmp.ne.s32.totalorder %s69, %s71
      %p78 = scmp.eq.s32.totalorder %s19, 1
      %p79 = por %p77, %p78
      %p80 = scmp.ne.s32.totalorder %s71, %s72
      %p81 = scmp.eq.s32.totalorder %s19, 0
      %p82 = por %p80, %p81
      %p83 = scmp.ne.s32.totalorder %s71, %s72
      %p84 = scmp.eq.s32.totalorder %s20, 1
      %p85 = por %p83, %p84
      %p87 = scmp.ne.s32.totalorder %s72, %s86
      %p88 = scmp.eq.s32.totalorder %s20, 0
      %p89 = por %p87, %p88
      %s91 = sadd.s32 %s90, 1
      %p94 = scmp.eq.s32.totalorder %s14, 1
      %p95 = scmp.ne.s32.totalorder %s90, %s92
      %p96 = scmp.eq.s32.totalorder %s14, 0
      %p97 = por %p95, %p96
      %p98 = scmp.ne.s32.totalorder %s90, %s92
      %p99 = scmp.eq.s32.totalorder %s19, 1
      %p100 = por %p98, %p99
      %p101 = scmp.ne.s32.totalorder %s92, %s93
      %p102 = scmp.eq.s32.totalorder %s19, 0
      %p103 = por %p101, %p102
      %p104 = scmp.ne.s32.totalorder %s92, %s93
      %p105 = scmp.eq.s32.totalorder %s20, 1
      %p106 = por %p104, %p105
      %p108 = scmp.ne.s32.totalorder %s93, %s107
      %p109 = scmp.eq.s32.totalorder %s20, 0
      %p110 = por %p108, %p109
      %s111 = ssub.s32 %s14, %s21
      %p112 = scmp.eq.s32.totalorder %s111, 0
      %s114 = sadd.s32 %s113, 1
      %s115 = scalar_select %p112, %s113, %s114
      %p118 = pneg %p112
      %p119 = scmp.eq.s32.totalorder %s14, 1
      %p120 = por %p118, %p119
      %p121 = scmp.ne.s32.totalorder %s113, %s116
      %p122 = scmp.eq.s32.totalorder %s14, 0
      %p123 = por %p121, %p122
      %p124 = scmp.ne.s32.totalorder %s113, %s116
      %p125 = scmp.eq.s32.totalorder %s19, 1
      %p126 = por %p124, %p125
      %p127 = scmp.ne.s32.totalorder %s116, %s117
      %p128 = scmp.eq.s32.totalorder %s19, 0
      %p129 = por %p127, %p128
      %p130 = scmp.ne.s32.totalorder %s116, %s117
      %p131 = scmp.eq.s32.totalorder %s20, 1
      %p132 = por %p130, %p131
      %p134 = scmp.ne.s32.totalorder %s117, %s133
      %p135 = scmp.eq.s32.totalorder %s20, 0
      %p136 = por %p134, %p135
      %p137 = scmp.le.s32.totalorder 1, %s14
      %p138 = scmp.lt.s32.totalorder %s14, 3
      %p139 = pnand %p137, %p138
      %p140 = pneg %p139
      // Predicated region
      $region9: #{feedback_forward.4} parent=5 // pred_check
        _
      $region10: #{feedback_forward.4} parent=5 // pred_check_branch
        %142 = sbr.rel (%p139) target = $region12
      $region11: #{feedback_forward.4} parent=5 // pred_region
        %s143 = ssub.s32 %s14, 1
        // Predicated region
        $region13: #{feedback_forward.4} parent=11 // pred_check
          %p144 = pneg %p61
        $region14: #{feedback_forward.4} parent=11 // pred_check_branch
          %146 = sbr.rel (%p144) target = $region16
        $region15: #{feedback_forward.4} parent=11 // pred_region
          _
        $region16: #{feedback_forward.4} parent=11 // pred_fallthru
          _
        // Predicated region
        $region17: #{feedback_forward.4} parent=11 // pred_check
          %p147 = pneg %p82
        $region18: #{feedback_forward.4} parent=11 // pred_check_branch
          %149 = sbr.rel (%p147) target = $region20
        $region19: #{feedback_forward.4} parent=11 // pred_region
          _
        $region20: #{feedback_forward.4} parent=11 // pred_fallthru
          _
        // Predicated region
        $region21: #{feedback_forward.4} parent=11 // pred_check
          %p150 = pneg %p103
        $region22: #{feedback_forward.4} parent=11 // pred_check_branch
          %152 = sbr.rel (%p150) target = $region24
        $region23: #{feedback_forward.4} parent=11 // pred_region
          %154 = vsyncadd [#allocation5], 0
          %s155 = sshll.u32 %s3, 4
          %s156 = int_to_ptr.hbm [resolvable:$true] %s155
          %s157 = sshll.u32 [#allocation4], 4
          %s158 = int_to_ptr.vmem [resolvable:$true] %s157
          %163 = dma.hbm_to_vmem [thread:$0]  %s156, 1024, %s158, [#allocation5], 64, 64, 4
        $region24: #{feedback_forward.4} parent=11 // pred_fallthru
          _
      $region12: #{feedback_forward.4} parent=5 // pred_fallthru
        _
      %p164 = scmp.lt.s32.totalorder %s14, 2
      // Predicated region
      $region25: #{feedback_forward.4} parent=5 // pred_check
        %p165 = pneg %p164
      $region26: #{feedback_forward.4} parent=5 // pred_check_branch
        %167 = sbr.rel (%p165) target = $region28
      $region27: #{feedback_forward.4} parent=5 // pred_region
        // Predicated region
        $region29: #{feedback_forward.4} parent=27 // pred_check
          %p168 = pneg %p34
        $region30: #{feedback_forward.4} parent=27 // pred_check_branch
          %170 = sbr.rel (%p168) target = $region32
        $region31: #{feedback_forward.4} parent=27 // pred_region
          %s171 = sand.u32 %s24, 1
          %s172 = scalar_lea.sflag [#allocation3], %s171
          %s173 = sand.u32 %s24, 1
          %s174 = smul.addr %s173, 32
          %s175 = scalar_lea.vmem [#allocation2], %s174
          %s176 = smul.u32 8, %s14
          %178 = vsyncadd %s172, 0
          %s179 = smul.addr %s176, 4
          %s180 = scalar_lea.hbm %s0, %s179
          %s181 = sshll.u32 %s180, 4
          %s182 = int_to_ptr.hbm [resolvable:$true] %s181
          %s183 = sshll.u32 %s175, 4
          %s184 = int_to_ptr.vmem [resolvable:$true] %s183
          %189 = dma.hbm_to_vmem [thread:$0]  %s182, 512, %s184, %s172, 64, 64, 4
        $region32: #{feedback_forward.4} parent=27 // pred_fallthru
          _
      $region28: #{feedback_forward.4} parent=5 // pred_fallthru
        _
      %p190 = scmp.le.s32.totalorder 1, %s14
      %p191 = scmp.lt.s32.totalorder %s14, 3
      %p192 = pnand %p190, %p191
      %p193 = pneg %p192
      // Predicated region
      $region33: #{feedback_forward.4} parent=5 // pred_check
        _
      $region34: #{feedback_forward.4} parent=5 // pred_check_branch
        %195 = sbr.rel (%p192) target = $region36
      $region35: #{feedback_forward.4} parent=5 // pred_region
        %s196 = ssub.s32 %s14, 1
        %s197 = sand.u32 %s27, 1
        %s198 = scalar_lea.sflag [#allocation3], %s197
        %s199 = sand.u32 %s27, 1
        %s200 = smul.addr %s199, 32
        %s201 = scalar_lea.vmem [#allocation2], %s200
        // Predicated region
        $region37: #{feedback_forward.4} parent=35 // pred_check
          %p202 = pneg %p40
        $region38: #{feedback_forward.4} parent=35 // pred_check_branch
          %204 = sbr.rel (%p202) target = $region40
        $region39: #{feedback_forward.4} parent=35 // pred_region
          %206 = dma.done %s198, 512
        $region40: #{feedback_forward.4} parent=35 // pred_fallthru
          _
        // Predicated region
        $region41: #{feedback_forward.4} parent=35 // pred_check
          %p207 = pneg %p103
        $region42: #{feedback_forward.4} parent=35 // pred_check_branch
          %209 = sbr.rel (%p207) target = $region44
        $region43: #{feedback_forward.4} parent=35 // pred_region
          %211 = dma.done [#allocation5], 1024
        $region44: #{feedback_forward.4} parent=35 // pred_fallthru
          _
        %s212 = sand.u32 %s27, 1
        %s213 = scalar_lea.sflag [#allocation3], %s212
        %s214 = sand.u32 %s27, 1
        %s215 = smul.addr %s214, 32
        %s216 = scalar_lea.vmem [#allocation2], %s215
        %p217 = pneg %p40
        %p218 = pneg %p37
        %p219 = pneg %p61
        %p220 = pneg %p58
        %p221 = pneg %p82
        %p222 = pneg %p79
        %p223 = pneg %p103
        %p224 = pneg %p100
        %p225 = pneg %p129
        %p226 = pneg %p126
        %s227 = smul.u32 8, %s19
        %p228 = scmp.lt.s32.totalorder %s227, 15
        %s229 = scalar_select %p228, %s227, 15
        %s230 = smul.addr %s229, 4
        %s231 = scalar_lea.vmem %s4, %s230
        %s232 = smul.u32 8, %s19
        %s233 = smul.u32 8, %s19
        %p234 = scmp.lt.s32.totalorder %s233, 15
        %s235 = scalar_select %p234, %s233, 15
        %s236 = smul.addr %s235, 4
        %s237 = scalar_lea.vmem %s4, %s236
        %s238 = smul.u32 8, %s19
        %v239 = vld [vmem:[%s201] sm:$0xf]
        %v240 = vld [vmem:[%s201 + $0x4] sm:$0xf]
        %v241 = vld [vmem:[%s201 + $0x8] sm:$0xf]
        %v242 = vld [vmem:[%s201 + $0xc] sm:$0xf]
        %v243 = vld [vmem:[%s201 + $0x10] sm:$0xf]
        %v244 = vld [vmem:[%s201 + $0x14] sm:$0xf]
        %v245 = vld [vmem:[%s201 + $0x18] sm:$0xf]
        %v246 = vld [vmem:[%s201 + $0x1c] sm:$0xf]
        %v247 = vld [vmem:[%s1] sm:$0xf]
        %v248 = vld [vmem:[%s1 + $0x4] sm:$0xf]
        %v249 = vld [vmem:[%s1 + $0x8] sm:$0xf]
        %v250 = vld [vmem:[%s1 + $0xc] sm:$0xf]
        %v251 = vld [vmem:[%s1 + $0x10] sm:$0xf]
        %v252 = vld [vmem:[%s1 + $0x14] sm:$0xf]
        %v253 = vld [vmem:[%s1 + $0x18] sm:$0xf]
        %v254 = vld [vmem:[%s1 + $0x1c] sm:$0xf]
        %v255 = vld [vmem:[%s1 + $0x20] sm:$0xf]
        %v256 = vld [vmem:[%s1 + $0x24] sm:$0xf]
        %v257 = vld [vmem:[%s1 + $0x28] sm:$0xf]
        %v258 = vld [vmem:[%s1 + $0x2c] sm:$0xf]
        %v259 = vld [vmem:[%s1 + $0x30] sm:$0xf]
        %v260 = vld [vmem:[%s1 + $0x34] sm:$0xf]
        %v261 = vld [vmem:[%s1 + $0x38] sm:$0xf]
        %v262 = vld [vmem:[%s1 + $0x3c] sm:$0xf]
        %v263 = vld [vmem:[%s2] sm:$0x1]
        %v265 = vperm.slane %v263, 0
        %v275 = vunpack.c.l.b16 %v239
        %v276 = vunpack.c.l.b16 %v240
        %v277 = vunpack.c.l.b16 %v241
        %v278 = vunpack.c.l.b16 %v242
        %v279 = vunpack.c.l.b16 %v243
        %v280 = vunpack.c.l.b16 %v244
        %v281 = vunpack.c.l.b16 %v245
        %v282 = vunpack.c.l.b16 %v246
        %v283 = vpack.c.b16 %v276, %v275
        %v284 = vpack.c.b16 %v278, %v277
        %v285 = vpack.c.b16 %v280, %v279
        %v286 = vpack.c.b16 %v282, %v281
        %v307 = vunpack.c.l.b16 %v247
        %v308 = vunpack.c.l.b16 %v248
        %v309 = vunpack.c.l.b16 %v249
        %v310 = vunpack.c.l.b16 %v250
        %v311 = vunpack.c.l.b16 %v251
        %v312 = vunpack.c.l.b16 %v252
        %v313 = vunpack.c.l.b16 %v253
        %v314 = vunpack.c.l.b16 %v254
        %v315 = vunpack.c.l.b16 %v255
        %v316 = vunpack.c.l.b16 %v256
        %v317 = vunpack.c.l.b16 %v257
        %v318 = vunpack.c.l.b16 %v258
        %v319 = vunpack.c.l.b16 %v259
        %v320 = vunpack.c.l.b16 %v260
        %v321 = vunpack.c.l.b16 %v261
        %v322 = vunpack.c.l.b16 %v262
        %v323 = vpack.c.b16 %v308, %v307
        %v324 = vpack.c.b16 %v310, %v309
        %v325 = vpack.c.b16 %v312, %v311
        %v326 = vpack.c.b16 %v314, %v313
        %v327 = vpack.c.b16 %v316, %v315
        %v328 = vpack.c.b16 %v318, %v317
        %v329 = vpack.c.b16 %v320, %v319
        %v330 = vpack.c.b16 %v322, %v321
        %339 = vmatpush.bf16.msra.mxu0 %v330
        %340 = vmatpush.bf16.msra.mxu0 %v329
        %341 = vmatpush.bf16.msra.mxu0 %v328
        %342 = vmatpush.bf16.msra.mxu0 %v327
        %343 = vmatpush.bf16.msra.mxu0 %v326
        %344 = vmatpush.bf16.msra.mxu0 %v325
        %345 = vmatpush.bf16.msra.mxu0 %v324
        %346 = vmatpush.bf16.msra.mxu0 %v323
        %347 = vmatmul.bf16.gmra.mxu0 %v283
        %v348 = vpop.f32.mrf.mxu0
        %v349 = vadd.f32 %v265, %v348
        %v350 = vpop.f32.mrf.mxu0
        %v351 = vadd.f32 %v265, %v350
        %352 = vmatmul.bf16.gmra.mxu0 %v284
        %v353 = vpop.f32.mrf.mxu0
        %v354 = vadd.f32 %v265, %v353
        %v355 = vpop.f32.mrf.mxu0
        %v356 = vadd.f32 %v265, %v355
        %357 = vmatmul.bf16.gmra.mxu0 %v285
        %v358 = vpop.f32.mrf.mxu0
        %v359 = vadd.f32 %v265, %v358
        %v360 = vpop.f32.mrf.mxu0
        %v361 = vadd.f32 %v265, %v360
        %362 = vmatmul.bf16.gmra.mxu0 %v286
        %v363 = vpop.f32.mrf.mxu0
        %v364 = vadd.f32 %v265, %v363
        %v365 = vpop.f32.mrf.mxu0
        %v366 = vadd.f32 %v265, %v365
        %367 = vdwg.mxu0
        %v368 = vmax.f32 %v349, 0.0
        %v369 = vmax.f32 %v351, 0.0
        %v370 = vmax.f32 %v354, 0.0
        %v371 = vmax.f32 %v356, 0.0
        %v372 = vmax.f32 %v359, 0.0
        %v373 = vmax.f32 %v361, 0.0
        %v374 = vmax.f32 %v364, 0.0
        %v375 = vmax.f32 %v366, 0.0
        %v376 = vpack.c.bf16 %v369, %v368
        %v377 = vpack.c.bf16 %v371, %v370
        %v378 = vpack.c.bf16 %v373, %v372
        %v379 = vpack.c.bf16 %v375, %v374
        %v380 = vld [vmem:[#allocation4] sm:$0xf]
        %v381 = vld [vmem:[#allocation4 + $0x4] sm:$0xf]
        %v382 = vld [vmem:[#allocation4 + $0x8] sm:$0xf]
        %v383 = vld [vmem:[#allocation4 + $0xc] sm:$0xf]
        %v384 = vld [vmem:[#allocation4 + $0x10] sm:$0xf]
        %v385 = vld [vmem:[#allocation4 + $0x14] sm:$0xf]
        %v386 = vld [vmem:[#allocation4 + $0x18] sm:$0xf]
        %v387 = vld [vmem:[#allocation4 + $0x1c] sm:$0xf]
        %v388 = vld [vmem:[#allocation4 + $0x20] sm:$0xf]
        %v389 = vld [vmem:[#allocation4 + $0x24] sm:$0xf]
        %v390 = vld [vmem:[#allocation4 + $0x28] sm:$0xf]
        %v391 = vld [vmem:[#allocation4 + $0x2c] sm:$0xf]
        %v392 = vld [vmem:[#allocation4 + $0x30] sm:$0xf]
        %v393 = vld [vmem:[#allocation4 + $0x34] sm:$0xf]
        %v394 = vld [vmem:[#allocation4 + $0x38] sm:$0xf]
        %v395 = vld [vmem:[#allocation4 + $0x3c] sm:$0xf]
        %v412 = vunpack.c.l.b16 %v380
        %v413 = vunpack.c.l.b16 %v381
        %v414 = vunpack.c.l.b16 %v382
        %v415 = vunpack.c.l.b16 %v383
        %v416 = vunpack.c.l.b16 %v384
        %v417 = vunpack.c.l.b16 %v385
        %v418 = vunpack.c.l.b16 %v386
        %v419 = vunpack.c.l.b16 %v387
        %v420 = vunpack.c.l.b16 %v388
        %v421 = vunpack.c.l.b16 %v389
        %v422 = vunpack.c.l.b16 %v390
        %v423 = vunpack.c.l.b16 %v391
        %v424 = vunpack.c.l.b16 %v392
        %v425 = vunpack.c.l.b16 %v393
        %v426 = vunpack.c.l.b16 %v394
        %v427 = vunpack.c.l.b16 %v395
        %v428 = vpack.c.b16 %v413, %v412
        %v429 = vpack.c.b16 %v415, %v414
        %v430 = vpack.c.b16 %v417, %v416
        %v431 = vpack.c.b16 %v419, %v418
        %v432 = vpack.c.b16 %v421, %v420
        %v433 = vpack.c.b16 %v423, %v422
        %v434 = vpack.c.b16 %v425, %v424
        %v435 = vpack.c.b16 %v427, %v426
        %444 = vmatpush.bf16.msra.mxu0 %v435
        %445 = vmatpush.bf16.msra.mxu0 %v434
        %446 = vmatpush.bf16.msra.mxu0 %v433
        %447 = vmatpush.bf16.msra.mxu0 %v432
        %448 = vmatpush.bf16.msra.mxu0 %v431
        %449 = vmatpush.bf16.msra.mxu0 %v430
        %450 = vmatpush.bf16.msra.mxu0 %v429
        %451 = vmatpush.bf16.msra.mxu0 %v428
        %452 = vmatmul.bf16.gmra.mxu0 %v376
        %v453 = vpop.f32.mrf.mxu0
        %v454 = vadd.f32 0.0, %v453
        %v455 = vpop.f32.mrf.mxu0
        %v456 = vadd.f32 0.0, %v455
        %457 = vmatmul.bf16.gmra.mxu0 %v377
        %v458 = vpop.f32.mrf.mxu0
        %v459 = vadd.f32 0.0, %v458
        %v460 = vpop.f32.mrf.mxu0
        %v461 = vadd.f32 0.0, %v460
        %462 = vmatmul.bf16.gmra.mxu0 %v378
        %v463 = vpop.f32.mrf.mxu0
        %v464 = vadd.f32 0.0, %v463
        %v465 = vpop.f32.mrf.mxu0
        %v466 = vadd.f32 0.0, %v465
        %467 = vmatmul.bf16.gmra.mxu0 %v379
        %v468 = vpop.f32.mrf.mxu0
        %v469 = vadd.f32 0.0, %v468
        %v470 = vpop.f32.mrf.mxu0
        %v471 = vadd.f32 0.0, %v470
        %472 = vdwg.mxu0
        %v473 = vpack.c.bf16 %v454, %v454
        %v474 = vpack.c.bf16 %v456, %v456
        %v475 = vpack.c.bf16 %v459, %v459
        %v476 = vpack.c.bf16 %v461, %v461
        %v477 = vpack.c.bf16 %v464, %v464
        %v478 = vpack.c.bf16 %v466, %v466
        %v479 = vpack.c.bf16 %v469, %v469
        %v480 = vpack.c.bf16 %v471, %v471
        %481 = vst [vmem:[%s237] sm:$0xf] %v473
        %482 = vst [vmem:[%s237 + $0x4] sm:$0xf] %v474
        %483 = vst [vmem:[%s237 + $0x8] sm:$0xf] %v475
        %484 = vst [vmem:[%s237 + $0xc] sm:$0xf] %v476
        %485 = vst [vmem:[%s237 + $0x10] sm:$0xf] %v477
        %486 = vst [vmem:[%s237 + $0x14] sm:$0xf] %v478
        %487 = vst [vmem:[%s237 + $0x18] sm:$0xf] %v479
        %488 = vst [vmem:[%s237 + $0x1c] sm:$0xf] %v480
        %s489 = smul.u32 8, %s19
        %p490 = scmp.lt.s32.totalorder %s489, 15
        %s491 = scalar_select %p490, %s489, 15
        %s492 = smul.addr %s491, 4
        %s493 = scalar_lea.vmem %s4, %s492
        // Predicated region
        $region45: #{feedback_forward.4} parent=35 // pred_check
          %p494 = pneg %p126
        $region46: #{feedback_forward.4} parent=35 // pred_check_branch
          %496 = sbr.rel (%p494) target = $region48
        $region47: #{feedback_forward.4} parent=35 // pred_region
          %s497 = smul.u32 8, %s19
        $region48: #{feedback_forward.4} parent=35 // pred_fallthru
          _
      $region36: #{feedback_forward.4} parent=5 // pred_fallthru
        _
      %p498 = scmp.le.s32.totalorder 2, %s14
      // Predicated region
      $region49: #{feedback_forward.4} parent=5 // pred_check
        %p499 = pneg %p498
      $region50: #{feedback_forward.4} parent=5 // pred_check_branch
        %501 = sbr.rel (%p499) target = $region52
      $region51: #{feedback_forward.4} parent=5 // pred_region
        %s502 = ssub.s32 %s14, 2
        // Predicated region
        $region53: #{feedback_forward.4} parent=51 // pred_check
          %p503 = pneg %p132
        $region54: #{feedback_forward.4} parent=51 // pred_check_branch
          %505 = sbr.rel (%p503) target = $region56
        $region55: #{feedback_forward.4} parent=51 // pred_region
          %s506 = smul.u32 8, %s20
          %p507 = scmp.lt.s32.totalorder %s506, 15
          %s508 = scalar_select %p507, %s506, 15
          %s509 = smul.addr %s508, 4
          %s510 = scalar_lea.vmem %s4, %s509
        $region56: #{feedback_forward.4} parent=51 // pred_fallthru
          _
      $region52: #{feedback_forward.4} parent=5 // pred_fallthru
        _
    $region6: #{feedback_forward.4} parent=1 // loop_footer
      %s18 = sadd.s32 1, %s14
    $region7: #{feedback_forward.4} parent=1 // loop_footer_branch
      %13 = sbr.rel target = $region3
    $region8: #{feedback_forward.4} parent=1 // loop_exit
      _
    %511 = vsyncpa [#allocation3], 1
    %s512 = scalar_lea.sflag [#allocation3], 1
    %513 = vsyncpa %s512, 1
    %514 = vsyncpa [#allocation5], 1

// kernel: feedback_forward.3
$region0: #{feedback_forward.3}
  #allocation0 [shape = 'u32[]', space=smem, size = 0x4, offset = 0x4, fixed_abs, tag = 'smem constant byte address 0x4 - core index']
  #allocation1 [shape = 'u32[72,128]{1,0:T(1,128)}', space=vmem, size = 0x9000, scoped, tag = 'internal scratch']
  #allocation2 [shape = 'f32[64,384]{1,0:T(8,128)}', space=vmem, size = 0x18000, scoped, tag = 'scratch operand']
  #allocation3 [shape = 's32[1]{0}', space=sflag, size = 0x4, scoped, tag = 'scratch operand']
  #allocation4 [shape = 's32[1]{0}', space=sflag, size = 0x4, scoped, tag = 'scoped memory for feedback_forward.3']
  #allocation5 [shape = 'u8[512]{0}', space=smem, size = 0x200, scoped, tag = 'prefetched SMEM operand 0']
  #allocation8 [shape = 's32[]', space=sflag, size = 0x4, offset = 0, fixed_abs, tag = 'sflag constant byte address 0x0 - dummy sync flag']
  %s0 = inlined_call_operand.hbm [shape: s32[128], index: 0, kind: input, shape index: {}]
  %s1 = inlined_call_operand.hbm [shape: f32[64,384], index: 1, kind: input, shape index: {}]
  %s2 = inlined_call_operand.hbm [shape: bf16[384,128], index: 2, kind: input, shape index: {}]
  %s3 = inlined_call_operand.vmem [shape: bf16[128,128], index: 3, kind: output, shape index: {}]
  %s4 = sld [smem:[#allocation0]]
  $region55: #{feedback_forward.3} parent=0
    _
  %s6 = ssub.s32 1, %s4
  %s7 = scalar_select 0, %s6, %s4
  %s9 = sshll.u32 %s0, 4
  %s10 = int_to_ptr.hbm [resolvable:$true] %s9
  %12 = dma.hbm_to_smem %s10, 16, [#allocation5], [#allocation4]
  %14 = dma.done [#allocation4], 16
  %15 = sfence
  $region1: #{feedback_forward.3} parent=0
    #allocation6 [shape = 'u8[98304]{0}', space=vmem, size = 0x18000, scoped, tag = 'input window, operand 2, single buffered']
    #allocation7 [shape = 's32[2]{0}', space=sflag, size = 0x8, scoped, tag = 'scoped memory for feedback_forward.3']
    %16 = vsyncpa [#allocation7], 0
    loop: start=0, step=1, limit=4
    $region2: #{feedback_forward.3} parent=1 // loop_pre_header
      _
    $region3: #{feedback_forward.3} parent=1 // loop_header
      %s18 = sphi 0, %s22
      %p19 = scmp.ge.s32.totalorder %s18, 4
      %s26 = sphi 0, %s26
      %s28 = sphi 0, %s26
      %s29 = sphi 0, %s28
      %s43 = sphi 0, %s29
      %s49 = sphi 0, %s51
      %s52 = sphi 0, %s49
      %s53 = sphi 0, %s52
      %s69 = sphi 0, %s53
    $region4: #{feedback_forward.3} parent=1 // loop_header_branch
      %21 = sbr.rel (%p19) target = $region8
    $region5: #{feedback_forward.3} parent=1 // loop_body
      %s23 = ssub.s32 %s18, 1
      %s24 = ssub.s32 %s18, 2
      %s25 = sadd.s32 %s18, 1
      %s27 = sadd.s32 %s26, 1
      %p30 = scmp.eq.s32.totalorder %s18, 1
      %p31 = scmp.ne.s32.totalorder %s26, %s28
      %p32 = scmp.eq.s32.totalorder %s18, 0
      %p33 = por %p31, %p32
      %p34 = scmp.ne.s32.totalorder %s26, %s28
      %p35 = scmp.eq.s32.totalorder %s23, 1
      %p36 = por %p34, %p35
      %p37 = scmp.ne.s32.totalorder %s28, %s29
      %p38 = scmp.eq.s32.totalorder %s23, 0
      %p39 = por %p37, %p38
      %p40 = scmp.ne.s32.totalorder %s28, %s29
      %p41 = scmp.eq.s32.totalorder %s24, 1
      %p42 = por %p40, %p41
      %p44 = scmp.ne.s32.totalorder %s29, %s43
      %p45 = scmp.eq.s32.totalorder %s24, 0
      %p46 = por %p44, %p45
      %s47 = ssub.s32 %s18, %s25
      %p48 = scmp.eq.s32.totalorder %s47, 0
      %s50 = sadd.s32 %s49, 1
      %s51 = scalar_select %p48, %s49, %s50
      %p54 = pneg %p48
      %p55 = scmp.eq.s32.totalorder %s18, 1
      %p56 = por %p54, %p55
      %p57 = scmp.ne.s32.totalorder %s49, %s52
      %p58 = scmp.eq.s32.totalorder %s18, 0
      %p59 = por %p57, %p58
      %p60 = scmp.ne.s32.totalorder %s49, %s52
      %p61 = scmp.eq.s32.totalorder %s23, 1
      %p62 = por %p60, %p61
      %p63 = scmp.ne.s32.totalorder %s52, %s53
      %p64 = scmp.eq.s32.totalorder %s23, 0
      %p65 = por %p63, %p64
      %p66 = scmp.ne.s32.totalorder %s52, %s53
      %p67 = scmp.eq.s32.totalorder %s24, 1
      %p68 = por %p66, %p67
      %p70 = scmp.ne.s32.totalorder %s53, %s69
      %p71 = scmp.eq.s32.totalorder %s24, 0
      %p72 = por %p70, %p71
      %p73 = scmp.le.s32.totalorder 1, %s18
      %p74 = scmp.lt.s32.totalorder %s18, 3
      %p75 = pnand %p73, %p74
      %p76 = pneg %p75
      // Predicated region
      $region9: #{feedback_forward.3} parent=5 // pred_check
        _
      $region10: #{feedback_forward.3} parent=5 // pred_check_branch
        %78 = sbr.rel (%p75) target = $region12
      $region11: #{feedback_forward.3} parent=5 // pred_region
        %s79 = ssub.s32 %s18, 1
        // Predicated region
        $region13: #{feedback_forward.3} parent=11 // pred_check
          %p80 = pneg %p39
        $region14: #{feedback_forward.3} parent=11 // pred_check_branch
          %82 = sbr.rel (%p80) target = $region16
        $region15: #{feedback_forward.3} parent=11 // pred_region
          %84 = vsyncadd [#allocation7], 0
          %s85 = sshll.u32 %s2, 4
          %s86 = int_to_ptr.hbm [resolvable:$true] %s85
          %s87 = sshll.u32 [#allocation6], 4
          %s88 = int_to_ptr.vmem [resolvable:$true] %s87
          %93 = dma.hbm_to_vmem [thread:$0]  %s86, 3072, %s88, [#allocation7], 64, 64, 4
        $region16: #{feedback_forward.3} parent=11 // pred_fallthru
          _
      $region12: #{feedback_forward.3} parent=5 // pred_fallthru
        _
      %p94 = scmp.lt.s32.totalorder %s18, 2
      // Predicated region
      $region17: #{feedback_forward.3} parent=5 // pred_check
        %p95 = pneg %p94
      $region18: #{feedback_forward.3} parent=5 // pred_check_branch
        %97 = sbr.rel (%p95) target = $region20
      $region19: #{feedback_forward.3} parent=5 // pred_region
        _
      $region20: #{feedback_forward.3} parent=5 // pred_fallthru
        _
      %p98 = scmp.le.s32.totalorder 1, %s18
      %p99 = scmp.lt.s32.totalorder %s18, 3
      %p100 = pnand %p98, %p99
      %p101 = pneg %p100
      // Predicated region
      $region21: #{feedback_forward.3} parent=5 // pred_check
        _
      $region22: #{feedback_forward.3} parent=5 // pred_check_branch
        %103 = sbr.rel (%p100) target = $region24
      $region23: #{feedback_forward.3} parent=5 // pred_region
        %s104 = ssub.s32 %s18, 1
        // Predicated region
        $region25: #{feedback_forward.3} parent=23 // pred_check
          %p105 = pneg %p39
        $region26: #{feedback_forward.3} parent=23 // pred_check_branch
          %107 = sbr.rel (%p105) target = $region28
        $region27: #{feedback_forward.3} parent=23 // pred_region
          %109 = dma.done [#allocation7], 3072
        $region28: #{feedback_forward.3} parent=23 // pred_fallthru
          _
        %p110 = pneg %p39
        %p111 = pneg %p36
        %p112 = pneg %p65
        %p113 = pneg %p62
        %s114 = smul.u32 8, %s23
        %p115 = scmp.lt.s32.totalorder %s114, 15
        %s116 = scalar_select %p115, %s114, 15
        %s117 = smul.addr %s116, 4
        %s118 = scalar_lea.vmem %s3, %s117
        %s119 = smul.u32 8, %s23
        %p120 = scmp.lt.s32.totalorder %s119, 15
        %s121 = scalar_select %p120, %s119, 15
        %s122 = smul.addr %s121, 4
        %s123 = scalar_lea.vmem %s3, %s122
        %s124 = smul.u32 8, %s23
        %s125 = smul.u32 %s23, 64
        loop: start=0, step=1, limit=64
        $region29: #{feedback_forward.3} parent=23 // loop_pre_header
          _
        $region30: #{feedback_forward.3} parent=23 // loop_header
          %s127 = sphi 0, %s131
          %p128 = scmp.ge.s32.totalorder %s127, 64
        $region31: #{feedback_forward.3} parent=23 // loop_header_branch
          %130 = sbr.rel (%p128) target = $region35
        $region32: #{feedback_forward.3} parent=23 // loop_body
          %s132 = sadd.s32 %s125, %s127
          %s133 = sld [smem:[#allocation5 + %s132]]
          %s134 = sshrl.u32 %s133, 3
          %s135 = sand.u32 %s133, 7
          %s136 = smul.u32 %s134, 24
          %s137 = sadd.s32 %s135, %s136
          %s138 = scalar_lea.hbm %s1, %s137
          %s139 = sshrl.u32 %s127, 3
          %s140 = sand.u32 %s127, 7
          %s141 = smul.u32 %s139, 24
          %s142 = sadd.s32 %s140, %s141
          %s143 = scalar_lea.vmem [#allocation2], %s142
          %s144 = sshll.u32 %s138, 4
          %s145 = int_to_ptr.hbm [resolvable:$true] %s144
          %s146 = sshll.u32 %s143, 4
          %s147 = int_to_ptr.vmem [resolvable:$true] %s146
          %151 = dma.hbm_to_vmem [thread:$0]  %s145, 48, %s147, [#allocation3], 128, 128, 1
        $region33: #{feedback_forward.3} parent=23 // loop_footer
          %s131 = sadd.s32 1, %s127
        $region34: #{feedback_forward.3} parent=23 // loop_footer_branch
          %126 = sbr.rel target = $region30
        $region35: #{feedback_forward.3} parent=23 // loop_exit
          _
        loop: start=0, step=1, limit=64
        $region36: #{feedback_forward.3} parent=23 // loop_pre_header
          _
        $region37: #{feedback_forward.3} parent=23 // loop_header
          %s153 = sphi 0, %s157
          %p154 = scmp.ge.s32.totalorder %s153, 64
        $region38: #{feedback_forward.3} parent=23 // loop_header_branch
          %156 = sbr.rel (%p154) target = $region42
        $region39: #{feedback_forward.3} parent=23 // loop_body
          %s158 = smul.u32 1, 3
          %s159 = sshll.u32 %s158, 4
          %160 = dma.done [#allocation3], %s159
        $region40: #{feedback_forward.3} parent=23 // loop_footer
          %s157 = sadd.s32 1, %s153
        $region41: #{feedback_forward.3} parent=23 // loop_footer_branch
          %152 = sbr.rel target = $region37
        $region42: #{feedback_forward.3} parent=23 // loop_exit
          _
        %v161 = vld [vmem:[#allocation2] sm:$0xff]
        %v162 = vld [vmem:[#allocation2 + $0x8] sm:$0xff]
        %v163 = vld [vmem:[#allocation2 + $0x10] sm:$0xff]
        %v164 = vld [vmem:[#allocation2 + $0x18] sm:$0xff]
        %v165 = vld [vmem:[#allocation2 + $0x20] sm:$0xff]
        %v166 = vld [vmem:[#allocation2 + $0x28] sm:$0xff]
        %v167 = vld [vmem:[#allocation2 + $0x30] sm:$0xff]
        %v168 = vld [vmem:[#allocation2 + $0x38] sm:$0xff]
        %v169 = vld [vmem:[#allocation2 + $0x40] sm:$0xff]
        %v170 = vld [vmem:[#allocation2 + $0x48] sm:$0xff]
        %v171 = vld [vmem:[#allocation2 + $0x50] sm:$0xff]
        %v172 = vld [vmem:[#allocation2 + $0x58] sm:$0xff]
        %v173 = vld [vmem:[#allocation2 + $0x60] sm:$0xff]
        %v174 = vld [vmem:[#allocation2 + $0x68] sm:$0xff]
        %v175 = vld [vmem:[#allocation2 + $0x70] sm:$0xff]
        %v176 = vld [vmem:[#allocation2 + $0x78] sm:$0xff]
        %v177 = vld [vmem:[#allocation2 + $0x80] sm:$0xff]
        %v178 = vld [vmem:[#allocation2 + $0x88] sm:$0xff]
        %v179 = vld [vmem:[#allocation2 + $0x90] sm:$0xff]
        %v180 = vld [vmem:[#allocation2 + $0x98] sm:$0xff]
        %v181 = vld [vmem:[#allocation2 + $0xa0] sm:$0xff]
        %v182 = vld [vmem:[#allocation2 + $0xa8] sm:$0xff]
        %v183 = vld [vmem:[#allocation2 + $0xb0] sm:$0xff]
        %v184 = vld [vmem:[#allocation2 + $0xb8] sm:$0xff]
        %v185 = vpack.c.bf16 %v164, %v161
        %v186 = vpack.c.bf16 %v165, %v162
        %v187 = vpack.c.bf16 %v166, %v163
        %v188 = vpack.c.bf16 %v170, %v167
        %v189 = vpack.c.bf16 %v171, %v168
        %v190 = vpack.c.bf16 %v172, %v169
        %v191 = vpack.c.bf16 %v176, %v173
        %v192 = vpack.c.bf16 %v177, %v174
        %v193 = vpack.c.bf16 %v178, %v175
        %v194 = vpack.c.bf16 %v182, %v179
        %v195 = vpack.c.bf16 %v183, %v180
        %v196 = vpack.c.bf16 %v184, %v181
        %v197 = vld [vmem:[#allocation6] sm:$0xf]
        %v198 = vld [vmem:[#allocation6 + $0x4] sm:$0xf]
        %v199 = vld [vmem:[#allocation6 + $0x8] sm:$0xf]
        %v200 = vld [vmem:[#allocation6 + $0xc] sm:$0xf]
        %v201 = vld [vmem:[#allocation6 + $0x10] sm:$0xf]
        %v202 = vld [vmem:[#allocation6 + $0x14] sm:$0xf]
        %v203 = vld [vmem:[#allocation6 + $0x18] sm:$0xf]
        %v204 = vld [vmem:[#allocation6 + $0x1c] sm:$0xf]
        %v205 = vld [vmem:[#allocation6 + $0x20] sm:$0xf]
        %v206 = vld [vmem:[#allocation6 + $0x24] sm:$0xf]
        %v207 = vld [vmem:[#allocation6 + $0x28] sm:$0xf]
        %v208 = vld [vmem:[#allocation6 + $0x2c] sm:$0xf]
        %v209 = vld [vmem:[#allocation6 + $0x30] sm:$0xf]
        %v210 = vld [vmem:[#allocation6 + $0x34] sm:$0xf]
        %v211 = vld [vmem:[#allocation6 + $0x38] sm:$0xf]
        %v212 = vld [vmem:[#allocation6 + $0x3c] sm:$0xf]
        %v213 = vld [vmem:[#allocation6 + $0x40] sm:$0xf]
        %v214 = vld [vmem:[#allocation6 + $0x44] sm:$0xf]
        %v215 = vld [vmem:[#allocation6 + $0x48] sm:$0xf]
        %v216 = vld [vmem:[#allocation6 + $0x4c] sm:$0xf]
        %v217 = vld [vmem:[#allocation6 + $0x50] sm:$0xf]
        %v218 = vld [vmem:[#allocation6 + $0x54] sm:$0xf]
        %v219 = vld [vmem:[#allocation6 + $0x58] sm:$0xf]
        %v220 = vld [vmem:[#allocation6 + $0x5c] sm:$0xf]
        %v221 = vld [vmem:[#allocation6 + $0x60] sm:$0xf]
        %v222 = vld [vmem:[#allocation6 + $0x64] sm:$0xf]
        %v223 = vld [vmem:[#allocation6 + $0x68] sm:$0xf]
        %v224 = vld [vmem:[#allocation6 + $0x6c] sm:$0xf]
        %v225 = vld [vmem:[#allocation6 + $0x70] sm:$0xf]
        %v226 = vld [vmem:[#allocation6 + $0x74] sm:$0xf]
        %v227 = vld [vmem:[#allocation6 + $0x78] sm:$0xf]
        %v228 = vld [vmem:[#allocation6 + $0x7c] sm:$0xf]
        %v229 = vld [vmem:[#allocation6 + $0x80] sm:$0xf]
        %v230 = vld [vmem:[#allocation6 + $0x84] sm:$0xf]
        %v231 = vld [vmem:[#allocation6 + $0x88] sm:$0xf]
        %v232 = vld [vmem:[#allocation6 + $0x8c] sm:$0xf]
        %v233 = vld [vmem:[#allocation6 + $0x90] sm:$0xf]
        %v234 = vld [vmem:[#allocation6 + $0x94] sm:$0xf]
        %v235 = vld [vmem:[#allocation6 + $0x98] sm:$0xf]
        %v236 = vld [vmem:[#allocation6 + $0x9c] sm:$0xf]
        %v237 = vld [vmem:[#allocation6 + $0xa0] sm:$0xf]
        %v238 = vld [vmem:[#allocation6 + $0xa4] sm:$0xf]
        %v239 = vld [vmem:[#allocation6 + $0xa8] sm:$0xf]
        %v240 = vld [vmem:[#allocation6 + $0xac] sm:$0xf]
        %v241 = vld [vmem:[#allocation6 + $0xb0] sm:$0xf]
        %v242 = vld [vmem:[#allocation6 + $0xb4] sm:$0xf]
        %v243 = vld [vmem:[#allocation6 + $0xb8] sm:$0xf]
        %v244 = vld [vmem:[#allocation6 + $0xbc] sm:$0xf]
        %v293 = vunpack.c.l.b16 %v197
        %v294 = vunpack.c.l.b16 %v198
        %v295 = vunpack.c.l.b16 %v199
        %v296 = vunpack.c.l.b16 %v200
        %v297 = vunpack.c.l.b16 %v201
        %v298 = vunpack.c.l.b16 %v202
        %v299 = vunpack.c.l.b16 %v203
        %v300 = vunpack.c.l.b16 %v204
        %v301 = vunpack.c.l.b16 %v205
        %v302 = vunpack.c.l.b16 %v206
        %v303 = vunpack.c.l.b16 %v207
        %v304 = vunpack.c.l.b16 %v208
        %v305 = vunpack.c.l.b16 %v209
        %v306 = vunpack.c.l.b16 %v210
        %v307 = vunpack.c.l.b16 %v211
        %v308 = vunpack.c.l.b16 %v212
        %v309 = vunpack.c.l.b16 %v213
        %v310 = vunpack.c.l.b16 %v214
        %v311 = vunpack.c.l.b16 %v215
        %v312 = vunpack.c.l.b16 %v216
        %v313 = vunpack.c.l.b16 %v217
        %v314 = vunpack.c.l.b16 %v218
        %v315 = vunpack.c.l.b16 %v219
        %v316 = vunpack.c.l.b16 %v220
        %v317 = vunpack.c.l.b16 %v221
        %v318 = vunpack.c.l.b16 %v222
        %v319 = vunpack.c.l.b16 %v223
        %v320 = vunpack.c.l.b16 %v224
        %v321 = vunpack.c.l.b16 %v225
        %v322 = vunpack.c.l.b16 %v226
        %v323 = vunpack.c.l.b16 %v227
        %v324 = vunpack.c.l.b16 %v228
        %v325 = vunpack.c.l.b16 %v229
        %v326 = vunpack.c.l.b16 %v230
        %v327 = vunpack.c.l.b16 %v231
        %v328 = vunpack.c.l.b16 %v232
        %v329 = vunpack.c.l.b16 %v233
        %v330 = vunpack.c.l.b16 %v234
        %v331 = vunpack.c.l.b16 %v235
        %v332 = vunpack.c.l.b16 %v236
        %v333 = vunpack.c.l.b16 %v237
        %v334 = vunpack.c.l.b16 %v238
        %v335 = vunpack.c.l.b16 %v239
        %v336 = vunpack.c.l.b16 %v240
        %v337 = vunpack.c.l.b16 %v241
        %v338 = vunpack.c.l.b16 %v242
        %v339 = vunpack.c.l.b16 %v243
        %v340 = vunpack.c.l.b16 %v244
        %v341 = vpack.c.b16 %v294, %v293
        %v342 = vpack.c.b16 %v296, %v295
        %v343 = vpack.c.b16 %v298, %v297
        %v344 = vpack.c.b16 %v300, %v299
        %v345 = vpack.c.b16 %v302, %v301
        %v346 = vpack.c.b16 %v304, %v303
        %v347 = vpack.c.b16 %v306, %v305
        %v348 = vpack.c.b16 %v308, %v307
        %v349 = vpack.c.b16 %v310, %v309
        %v350 = vpack.c.b16 %v312, %v311
        %v351 = vpack.c.b16 %v314, %v313
        %v352 = vpack.c.b16 %v316, %v315
        %v353 = vpack.c.b16 %v318, %v317
        %v354 = vpack.c.b16 %v320, %v319
        %v355 = vpack.c.b16 %v322, %v321
        %v356 = vpack.c.b16 %v324, %v323
        %v357 = vpack.c.b16 %v326, %v325
        %v358 = vpack.c.b16 %v328, %v327
        %v359 = vpack.c.b16 %v330, %v329
        %v360 = vpack.c.b16 %v332, %v331
        %v361 = vpack.c.b16 %v334, %v333
        %v362 = vpack.c.b16 %v336, %v335
        %v363 = vpack.c.b16 %v338, %v337
        %v364 = vpack.c.b16 %v340, %v339
        %389 = vmatpush.bf16.msra.mxu0 %v348
        %390 = vmatpush.bf16.msra.mxu0 %v347
        %391 = vmatpush.bf16.msra.mxu0 %v346
        %392 = vmatpush.bf16.msra.mxu0 %v345
        %393 = vmatpush.bf16.msra.mxu0 %v344
        %394 = vmatpush.bf16.msra.mxu0 %v343
        %395 = vmatpush.bf16.msra.mxu0 %v342
        %396 = vmatpush.bf16.msra.mxu0 %v341
        %397 = vmatmul.bf16.gmra.mxu0 %v185
        %v398 = vpop.f32.mrf.mxu0
        %v399 = vadd.f32 0.0, %v398
        %v400 = vpop.f32.mrf.mxu0
        %v401 = vadd.f32 0.0, %v400
        %402 = vmatmul.bf16.gmra.mxu0 %v188
        %v403 = vpop.f32.mrf.mxu0
        %v404 = vadd.f32 0.0, %v403
        %v405 = vpop.f32.mrf.mxu0
        %v406 = vadd.f32 0.0, %v405
        %407 = vmatmul.bf16.gmra.mxu0 %v191
        %v408 = vpop.f32.mrf.mxu0
        %v409 = vadd.f32 0.0, %v408
        %v410 = vpop.f32.mrf.mxu0
        %v411 = vadd.f32 0.0, %v410
        %412 = vmatmul.bf16.gmra.mxu0 %v194
        %v413 = vpop.f32.mrf.mxu0
        %v414 = vadd.f32 0.0, %v413
        %v415 = vpop.f32.mrf.mxu0
        %v416 = vadd.f32 0.0, %v415
        %417 = vdwg.mxu0
        %418 = vmatpush.bf16.msra.mxu0 %v356
        %419 = vmatpush.bf16.msra.mxu0 %v355
        %420 = vmatpush.bf16.msra.mxu0 %v354
        %421 = vmatpush.bf16.msra.mxu0 %v353
        %422 = vmatpush.bf16.msra.mxu0 %v352
        %423 = vmatpush.bf16.msra.mxu0 %v351
        %424 = vmatpush.bf16.msra.mxu0 %v350
        %425 = vmatpush.bf16.msra.mxu0 %v349
        %426 = vmatmul.bf16.gmra.mxu0 %v186
        %v427 = vpop.f32.mrf.mxu0
        %v428 = vadd.f32 %v399, %v427
        %v429 = vpop.f32.mrf.mxu0
        %v430 = vadd.f32 %v401, %v429
        %431 = vmatmul.bf16.gmra.mxu0 %v189
        %v432 = vpop.f32.mrf.mxu0
        %v433 = vadd.f32 %v404, %v432
        %v434 = vpop.f32.mrf.mxu0
        %v435 = vadd.f32 %v406, %v434
        %436 = vmatmul.bf16.gmra.mxu0 %v192
        %v437 = vpop.f32.mrf.mxu0
        %v438 = vadd.f32 %v409, %v437
        %v439 = vpop.f32.mrf.mxu0
        %v440 = vadd.f32 %v411, %v439
        %441 = vmatmul.bf16.gmra.mxu0 %v195
        %v442 = vpop.f32.mrf.mxu0
        %v443 = vadd.f32 %v414, %v442
        %v444 = vpop.f32.mrf.mxu0
        %v445 = vadd.f32 %v416, %v444
        %446 = vdwg.mxu0
        %447 = vmatpush.bf16.msra.mxu0 %v364
        %448 = vmatpush.bf16.msra.mxu0 %v363
        %449 = vmatpush.bf16.msra.mxu0 %v362
        %450 = vmatpush.bf16.msra.mxu0 %v361
        %451 = vmatpush.bf16.msra.mxu0 %v360
        %452 = vmatpush.bf16.msra.mxu0 %v359
        %453 = vmatpush.bf16.msra.mxu0 %v358
        %454 = vmatpush.bf16.msra.mxu0 %v357
        %455 = vmatmul.bf16.gmra.mxu0 %v187
        %v456 = vpop.f32.mrf.mxu0
        %v457 = vadd.f32 %v428, %v456
        %v458 = vpop.f32.mrf.mxu0
        %v459 = vadd.f32 %v430, %v458
        %460 = vmatmul.bf16.gmra.mxu0 %v190
        %v461 = vpop.f32.mrf.mxu0
        %v462 = vadd.f32 %v433, %v461
        %v463 = vpop.f32.mrf.mxu0
        %v464 = vadd.f32 %v435, %v463
        %465 = vmatmul.bf16.gmra.mxu0 %v193
        %v466 = vpop.f32.mrf.mxu0
        %v467 = vadd.f32 %v438, %v466
        %v468 = vpop.f32.mrf.mxu0
        %v469 = vadd.f32 %v440, %v468
        %470 = vmatmul.bf16.gmra.mxu0 %v196
        %v471 = vpop.f32.mrf.mxu0
        %v472 = vadd.f32 %v443, %v471
        %v473 = vpop.f32.mrf.mxu0
        %v474 = vadd.f32 %v445, %v473
        %475 = vdwg.mxu0
        %v476 = vpack.c.bf16 %v457, %v457
        %v477 = vpack.c.bf16 %v459, %v459
        %v478 = vpack.c.bf16 %v462, %v462
        %v479 = vpack.c.bf16 %v464, %v464
        %v480 = vpack.c.bf16 %v467, %v467
        %v481 = vpack.c.bf16 %v469, %v469
        %v482 = vpack.c.bf16 %v472, %v472
        %v483 = vpack.c.bf16 %v474, %v474
        %484 = vst [vmem:[%s123] sm:$0xf] %v476
        %485 = vst [vmem:[%s123 + $0x4] sm:$0xf] %v477
        %486 = vst [vmem:[%s123 + $0x8] sm:$0xf] %v478
        %487 = vst [vmem:[%s123 + $0xc] sm:$0xf] %v479
        %488 = vst [vmem:[%s123 + $0x10] sm:$0xf] %v480
        %489 = vst [vmem:[%s123 + $0x14] sm:$0xf] %v481
        %490 = vst [vmem:[%s123 + $0x18] sm:$0xf] %v482
        %491 = vst [vmem:[%s123 + $0x1c] sm:$0xf] %v483
        %s492 = smul.u32 8, %s23
        %p493 = scmp.lt.s32.totalorder %s492, 15
        %s494 = scalar_select %p493, %s492, 15
        %s495 = smul.addr %s494, 4
        %s496 = scalar_lea.vmem %s3, %s495
        // Predicated region
        $region43: #{feedback_forward.3} parent=23 // pred_check
          %p497 = pneg %p62
        $region44: #{feedback_forward.3} parent=23 // pred_check_branch
          %499 = sbr.rel (%p497) target = $region46
        $region45: #{feedback_forward.3} parent=23 // pred_region
          %s500 = smul.u32 8, %s23
        $region46: #{feedback_forward.3} parent=23 // pred_fallthru
          _
      $region24: #{feedback_forward.3} parent=5 // pred_fallthru
        _
      %p501 = scmp.le.s32.totalorder 2, %s18
      // Predicated region
      $region47: #{feedback_forward.3} parent=5 // pred_check
        %p502 = pneg %p501
      $region48: #{feedback_forward.3} parent=5 // pred_check_branch
        %504 = sbr.rel (%p502) target = $region50
      $region49: #{feedback_forward.3} parent=5 // pred_region
        %s505 = ssub.s32 %s18, 2
        // Predicated region
        $region51: #{feedback_forward.3} parent=49 // pred_check
          %p506 = pneg %p68
        $region52: #{feedback_forward.3} parent=49 // pred_check_branch
          %508 = sbr.rel (%p506) target = $region54
        $region53: #{feedback_forward.3} parent=49 // pred_region
          %s509 = smul.u32 8, %s24
          %p510 = scmp.lt.s32.totalorder %s509, 15
          %s511 = scalar_select %p510, %s509, 15
          %s512 = smul.addr %s511, 4
          %s513 = scalar_lea.vmem %s3, %s512
        $region54: #{feedback_forward.3} parent=49 // pred_fallthru
          _
      $region50: #{feedback_forward.3} parent=5 // pred_fallthru
        _
    $region6: #{feedback_forward.3} parent=1 // loop_footer
      %s22 = sadd.s32 1, %s18
    $region7: #{feedback_forward.3} parent=1 // loop_footer_branch
      %17 = sbr.rel target = $region3
    $region8: #{feedback_forward.3} parent=1 // loop_exit
      _
    %514 = vsyncpa [#allocation7], 1
    %s515 = scalar_lea.sflag [#allocation7], 1
    %516 = vsyncpa %s515, 1
  %517 = vsyncmov [#allocation3]
  %s518 = vpop.sfrf %517
  %p519 = scmp.eq.s32.totalorder %s518, 0
  %p520 = pneg %p519
  %522 = shalt.err (%p520)

</llo_original>
